<compile_context>
chip_gen: v7x
topology: tpu7x:2x2x1
jax: 0.10.0
libtpu: 0.0.40
codegen_flags: <defaults>
</compile_context>

<pallas_src>
import functools

import numpy as np
import jax
import jax.numpy as jnp
from jax import lax
from jax.experimental import pallas as pl
from jax.experimental.pallas import tpu as pltpu


# ----------------------------- Pallas kernels ------------------------------

def _ln_qkv_kernel(x_ref, g_ref, b_ref, w_ref, o_ref):
    """LayerNorm over channels + 1x1 conv (bf16 matmul, f32 accumulate)."""
    x = x_ref[...]                                    # (T, C) f32
    mu = jnp.mean(x, axis=-1, keepdims=True)
    xc = x - mu
    var = jnp.mean(xc * xc, axis=-1, keepdims=True)   # biased variance (torch LN)
    xn = xc * lax.rsqrt(var + 1e-5)
    xn = xn * g_ref[...] + b_ref[...]
    o_ref[...] = jnp.dot(xn.astype(w_ref.dtype), w_ref[...],
                         preferred_element_type=jnp.float32)


def _attn_kernel(q_ref, k_ref, v_ref, x_ref, rpbm_ref, sel_ref, exp_ref, grp_ref,
                 wc_ref, bpc_ref, wpcr_ref, o_ref, *,
                 num_anchor, n, cdr, num_heads):
    """Vectorized per-pixel attention over ks*ks samples + folded proj/residual/cls."""
    f32 = jnp.float32
    q = q_ref[...]                                                       # (T, cdr)
    # residual + biases folded through cls:  x @ Wc + (bp @ Wc + bc)
    base = jnp.dot(x_ref[...], wc_ref[...], preferred_element_type=f32) + bpc_ref[...]
    # pre-scaled rpb logits (block-diagonal per head), shared across anchors
    rpb_t = jnp.dot(q, rpbm_ref[...], preferred_element_type=f32)        # (T, nh*n)
    # q replicated once per sample position (lane-dense): (T, n*cdr)
    q_rep = jnp.concatenate([q] * n, axis=-1)
    sel = sel_ref[...]                                                   # (n*cdr, nh*n), *scale
    expd = exp_ref[...]                                                  # (nh*n, n*cdr)
    grp = grp_ref[...]                                                   # (nh*n, nh*n) block-ones
    wpcr = wpcr_ref[...]                                                 # (n*cdr, nc)

    outs = []
    for a in range(num_anchor):
        lo = a * n * cdr
        k_slab = k_ref[:, lo:lo + n * cdr].astype(f32)                   # (T, n*cdr)
        v_slab = v_ref[:, lo:lo + n * cdr].astype(f32)
        # scores = scale*(q.k + q.rpb) per (head, sample); scale folded into sel/rpbm
        s = jnp.dot(k_slab * q_rep, sel, preferred_element_type=f32) + rpb_t  # (T, nh*n)
        # per-head softmax: one exp + one approx reciprocal across all heads;
        # the per-head denominator (sum + broadcast) is one block-ones matmul.
        m_cols = [jnp.broadcast_to(
                      jnp.max(s[:, h * n:(h + 1) * n], axis=-1, keepdims=True),
                      (s.shape[0], n)) for h in range(num_heads)]
        m = jnp.concatenate(m_cols, axis=-1)                             # (T, nh*n)
        e = jnp.exp(s - m)                                               # single EUP pass
        denom = jnp.dot(e, grp, preferred_element_type=f32)              # per-head sum, bcast
        attn = e * pl.reciprocal(denom, approx=True)                     # (T, nh*n)
        # broadcast probs to [sample, channel] layout; weighted sum over samples
        # and the folded proj+cls projection are absorbed into the wpcr matmul.
        attn_e = jnp.dot(attn, expd, preferred_element_type=f32)         # (T, n*cdr)
        z = jnp.dot(v_slab * attn_e, wpcr, preferred_element_type=f32) + base
        outs.append(z)                                                   # (T, nc)

    out = outs[0] if num_anchor == 1 else jnp.concatenate(outs, axis=-1)
    o_ref[...] = out.astype(o_ref.dtype)                                 # one dense store


# ----------------------------- Pallas wrappers ------------------------------

def _round_up(x, m):
    return (x + m - 1) // m * m


def _pad_rows(a, rows):
    if a.shape[0] == rows:
        return a
    return jnp.pad(a, ((0, rows - a.shape[0]), (0, 0)))


def ln_qkv(x_p, gamma, beta, w_qkv, *, tile=1024, vmem_budget=24 << 20):
    npix, C = x_p.shape
    out_c = w_qkv.shape[1]
    row_bytes = 4 * (C + out_c)
    t_fit = max(8, (vmem_budget // (2 * row_bytes)) // 8 * 8)
    tile = min(tile, t_fit, _round_up(npix, 8))
    npad = _round_up(npix, tile)
    out = pl.pallas_call(
        _ln_qkv_kernel,
        out_shape=jax.ShapeDtypeStruct((npad, out_c), jnp.float32),
        grid=(npad // tile,),
        in_specs=[pl.BlockSpec((tile, C), lambda i: (i, 0)),
                  pl.BlockSpec((1, C), lambda i: (0, 0)),
                  pl.BlockSpec((1, C), lambda i: (0, 0)),
                  pl.BlockSpec((C, out_c), lambda i: (0, 0))],
        out_specs=pl.BlockSpec((tile, out_c), lambda i: (i, 0)),
        compiler_params=pltpu.CompilerParams(dimension_semantics=("parallel",)),
    )(_pad_rows(x_p, npad), gamma.reshape(1, C), beta.reshape(1, C),
      w_qkv.astype(jnp.bfloat16))
    return out[:npix]


def attn_proj_cls(q_p, k_a, v_a, x_p, rpb_mat, sel, expand, grp, wc, bias_pc, wpc_rep, *,
                  num_anchor, n, num_heads, num_class,
                  tile=1024, vmem_budget=24 << 20):
    npix, cdr = q_p.shape
    C = x_p.shape[1]
    kn = k_a.shape[1]
    # Explicit VMEM budget: double-buffered streamed blocks must fit `vmem_budget`
    # (stays below the 32 MiB default scoped limit on v5e/v6e/v7x).
    row_bytes = (q_p.dtype.itemsize * cdr + x_p.dtype.itemsize * C
                 + k_a.dtype.itemsize * kn + v_a.dtype.itemsize * kn
                 + 4 * num_anchor * num_class)
    t_fit = max(8, (vmem_budget // (2 * row_bytes)) // 8 * 8)
    tile = min(tile, t_fit, _round_up(npix, 8))
    npad = _round_up(npix, tile)

    kern = functools.partial(_attn_kernel, num_anchor=num_anchor, n=n, cdr=cdr,
                             num_heads=num_heads)
    out = pl.pallas_call(
        kern,
        out_shape=jax.ShapeDtypeStruct((npad, num_anchor * num_class), jnp.float32),
        grid=(npad // tile,),
        in_specs=[pl.BlockSpec((tile, cdr), lambda i: (i, 0)),
                  pl.BlockSpec((tile, kn), lambda i: (i, 0)),
                  pl.BlockSpec((tile, kn), lambda i: (i, 0)),
                  pl.BlockSpec((tile, C), lambda i: (i, 0)),
                  pl.BlockSpec(rpb_mat.shape, lambda i: (0, 0)),
                  pl.BlockSpec(sel.shape, lambda i: (0, 0)),
                  pl.BlockSpec(expand.shape, lambda i: (0, 0)),
                  pl.BlockSpec(grp.shape, lambda i: (0, 0)),
                  pl.BlockSpec(wc.shape, lambda i: (0, 0)),
                  pl.BlockSpec((1, num_class), lambda i: (0, 0)),
                  pl.BlockSpec(wpc_rep.shape, lambda i: (0, 0))],
        out_specs=pl.BlockSpec((tile, num_anchor * num_class), lambda i: (i, 0)),
        compiler_params=pltpu.CompilerParams(dimension_semantics=("parallel",)),
    )(_pad_rows(q_p, npad), _pad_rows(k_a, npad), _pad_rows(v_a, npad),
      _pad_rows(x_p, npad), rpb_mat, sel, expand, grp, wc,
      bias_pc.reshape(1, num_class), wpc_rep)
    return out[:npix]


# ----------------------------- plain-JAX glue -------------------------------

def _bilinear_sample_one(img, ys, xs):
    """grid_sample(bilinear, padding_mode='zeros', align_corners=True) on raw coords.
    img: (C, H, W); ys/xs: (...,) row/col pixel coordinates."""
    C, H, W = img.shape
    y0 = jnp.floor(ys)
    x0 = jnp.floor(xs)
    y1 = y0 + 1.0
    x1 = x0 + 1.0
    wy1 = ys - y0
    wy0 = 1.0 - wy1
    wx1 = xs - x0
    wx0 = 1.0 - wx1

    def g(yi, xi):
        valid = ((yi >= 0) & (yi <= H - 1) & (xi >= 0) & (xi <= W - 1)).astype(img.dtype)
        yc = jnp.clip(yi, 0, H - 1).astype(jnp.int32)
        xc = jnp.clip(xi, 0, W - 1).astype(jnp.int32)
        return img[:, yc, xc] * valid

    return (g(y0, x0) * (wy0 * wx0) + g(y0, x1) * (wy0 * wx1)
            + g(y1, x0) * (wy1 * wx0) + g(y1, x1) * (wy1 * wx1))


def baca_forward(params, x, offset, *, cfg):
    B, C, H, W = x.shape
    nh = cfg['num_heads']
    dr = cfg['dim_reduction']
    g = cfg['group']
    ks = cfg['ks']
    na = cfg['num_anchor']
    nc = cfg['num_class']
    cdr = C // dr
    hd = cdr // nh
    gc = cdr // g
    n = ks * ks
    scale = hd ** (-0.5)
    npix = B * H * W

    x_p = x.transpose(0, 2, 3, 1).reshape(npix, C)

    # --- kernel 1: LayerNorm + 1x1 qkv conv ---
    qkv = ln_qkv(x_p, params['ln1_g'], params['ln1_b'], params['w_qkv'])
    q_p, k_p, v_p = qkv[:, :cdr], qkv[:, cdr:2 * cdr], qkv[:, 2 * cdr:]

    def to_img(t):
        return t.reshape(B, H, W, cdr).transpose(0, 3, 1, 2)

    q_img, k_img, v_img = to_img(q_p), to_img(k_p), to_img(v_p)

    # --- offset prediction (tiny auxiliary convs kept in plain JAX) ---
    # TODO(synk): conv_offset's 3x3 depthwise/full convs are not fused into Pallas.
    q_off = q_img.reshape(B * g, gc, H, W)
    t = lax.conv_general_dilated(q_off, params['off_dw_w'], (1, 1), ((1, 1), (1, 1)),
                                 dimension_numbers=('NCHW', 'OIHW', 'NCHW'),
                                 feature_group_count=gc)
    tt = t.transpose(0, 2, 3, 1)
    mu = jnp.mean(tt, axis=-1, keepdims=True)
    var = jnp.mean((tt - mu) ** 2, axis=-1, keepdims=True)
    tt = (tt - mu) * lax.rsqrt(var + 1e-5) * params['off_ln_g'] + params['off_ln_b']
    t = jax.nn.gelu(tt.transpose(0, 3, 1, 2), approximate=False)
    pred_off = lax.conv_general_dilated(t, params['off_conv_w'], (1, 1), ((1, 1), (1, 1)),
                                        dimension_numbers=('NCHW', 'OIHW', 'NCHW'))
    pred_off = pred_off + params['off_conv_b'][None, :, None, None]

    base_off = jnp.broadcast_to(offset[:, None],
                                (B, g) + offset.shape[1:]).reshape(B * g, -1, H, W)
    off = jnp.tanh(pred_off) * cfg['mul_factor'] + base_off      # (B*g, na*2*n, H, W)
    off = off.reshape(B * g, na, ks, ks, 2, H, W)
    ys, xs = off[:, :, :, :, 0], off[:, :, :, :, 1]              # raw (row, col) coords

    # --- extract_feats: bilinear grid-sample gather (plain JAX) ---
    # TODO(synk): the gather+transpose materializes the 9x-expanded k/v slabs in HBM
    # before kernel 2 re-reads them; an in-kernel DMA gather would save one round trip.
    k_grp = k_img.reshape(B * g, gc, H, W)
    v_grp = v_img.reshape(B * g, gc, H, W)
    samp = jax.vmap(_bilinear_sample_one)
    k_s = samp(k_grp, ys, xs)                                    # (B*g, gc, na, ks, ks, H, W)
    v_s = samp(v_grp, ys, xs)

    def arrange(s):
        s = s.reshape(B, g, gc, na, ks, ks, H, W)
        # -> (B, H, W, na, kh, kw, g, gc): per-pixel layout [anchor, sample, channel]
        s = s.transpose(0, 6, 7, 3, 4, 5, 1, 2)
        return s.reshape(npix, na * n * cdr).astype(jnp.bfloat16)   # bf16 slabs (HBM traffic)

    k_a, v_a = arrange(k_s), arrange(v_s)

    # --- constant 0/1 selector matrices for the per-pixel contractions ---
    sel_np = np.zeros((n * cdr, nh * n), np.float32)
    for j in range(n):
        for h in range(nh):
            sel_np[j * cdr + h * hd:j * cdr + (h + 1) * hd, h * n + j] = 1.0
    sel = jnp.asarray(sel_np * np.float32(scale))   # sum over hd per (head, sample), *scale
    expand = jnp.asarray(sel_np.T.copy())           # broadcast probs back to channels
    grp_np = np.zeros((nh * n, nh * n), np.float32)
    for h in range(nh):
        grp_np[h * n:(h + 1) * n, h * n:(h + 1) * n] = 1.0
    grp = jnp.asarray(grp_np)                        # per-head sum + broadcast for softmax denom

    # --- rpb folded to a block-diagonal (cdr, nh*n) matrix (pre-scaled) ---
    r = params['rpb'][0, :, 0, 0]            # (nh, n, hd)
    rpb_mat = jnp.zeros((cdr, nh * n), jnp.float32)
    for h in range(nh):
        rpb_mat = rpb_mat.at[h * hd:(h + 1) * hd, h * n:(h + 1) * n].set(r[h].T)
    rpb_mat = rpb_mat * scale

    # --- proj+cls folded: z = out_a @ (Wp@Wc) + x @ Wc + (bp@Wc + bc) ---
    wpc = params['proj_w'] @ params['cls_w']                          # (cdr, nc)
    wpc_rep = jnp.tile(wpc, (n, 1))                                   # (n*cdr, nc)
    bias_pc = params['proj_b'] @ params['cls_w'] + params['cls_b']    # (nc,)

    # --- kernel 2: attention + folded proj/residual/cls ---
    cls = attn_proj_cls(q_p, k_a, v_a, x_p, rpb_mat, sel, expand, grp,
                        params['cls_w'], bias_pc, wpc_rep,
                        num_anchor=na, n=n, num_heads=nh, num_class=nc)

    # 'b (h w) na c -> b (na c) h w'
    return cls.reshape(B, H, W, na * nc).transpose(0, 3, 1, 2)


# ----------------------------- parameter init -------------------------------

def init_params(key, *, dim, num_class, num_anchor, ks, num_heads, dim_reduction, group):
    cdr = dim // dim_reduction
    hd = cdr // num_heads
    gc = cdr // group
    n = ks * ks
    ks_ = jax.random.split(key, 12)
    p = {}
    p['ln1_g'] = 1.0 + 0.1 * jax.random.normal(ks_[0], (dim,), jnp.float32)
    p['ln1_b'] = 0.1 * jax.random.normal(ks_[1], (dim,), jnp.float32)
    # qkv Conv2d(dim, 3*cdr, 1, bias=False): weight -> matmul (dim, 3*cdr)
    p['w_qkv'] = 0.1 * jax.random.normal(ks_[2], (dim, 3 * cdr), jnp.float32)
    p['off_dw_w'] = 0.1 * jax.random.normal(ks_[3], (gc, 1, 3, 3), jnp.float32)
    p['off_ln_g'] = 1.0 + 0.1 * jax.random.normal(ks_[4], (gc,), jnp.float32)
    p['off_ln_b'] = 0.1 * jax.random.normal(ks_[5], (gc,), jnp.float32)
    p['off_conv_w'] = 0.1 * jax.random.normal(ks_[6], (num_anchor * 2 * n, gc, 3, 3), jnp.float32)
    p['off_conv_b'] = 0.1 * jax.random.normal(ks_[7], (num_anchor * 2 * n,), jnp.float32)
    # relative_position_bias_table: (1, nh, 1, 1, n, hd)
    p['rpb'] = 0.02 * jax.random.normal(ks_[8], (1, num_heads, 1, 1, n, hd), jnp.float32)
    # proj Linear(cdr, dim): stored as (cdr, dim) for x @ W
    p['proj_w'] = 0.1 * jax.random.normal(ks_[9], (cdr, dim), jnp.float32)
    p['proj_b'] = 0.1 * jax.random.normal(ks_[10], (dim,), jnp.float32)
    # cls Linear(dim, num_class)
    p['cls_w'] = 0.1 * jax.random.normal(ks_[11], (dim, num_class), jnp.float32)
    p['cls_b'] = 0.01 * jnp.arange(num_class, dtype=jnp.float32)
    return p


# ----------------------------------- main ------------------------------------

if __name__ == "__main__":
    B, dim, H, W = 2, 64, 8, 8
    num_class, num_anchor, ks = 16, 1, 3
    num_heads, dim_reduction, group = 4, 4, 2
    cfg = dict(num_heads=num_heads, dim_reduction=dim_reduction, group=group,
               ks=ks, num_anchor=num_anchor, num_class=num_class, mul_factor=5.0)

    key = jax.random.PRNGKey(0)
    kp, kx, ko = jax.random.split(key, 3)
    params = init_params(kp, dim=dim, num_class=num_class, num_anchor=num_anchor,
                         ks=ks, num_heads=num_heads, dim_reduction=dim_reduction,
                         group=group)
    x = jax.random.normal(kx, (B, dim, H, W), jnp.float32)
    # offset input: absolute sampling coordinates per anchor/kernel position
    offset = jax.random.uniform(ko, (B, num_anchor * 2 * ks * ks, H, W),
                                jnp.float32, minval=0.0, maxval=float(H - 1))

    fwd = jax.jit(functools.partial(baca_forward, cfg=cfg))
    out = fwd(params, x, offset)
    jax.block_until_ready(out)
    assert out.shape == (B, num_anchor * num_class, H, W), out.shape
    assert out.dtype == jnp.float32
    assert bool(jnp.isfinite(out).all())
    print("KERNEL_OK")
</pallas_src>

<mosaic_0001>
module attributes {stable_mosaic.version = 11 : i64} {
  func.func @_ln_qkv_kernel(%arg0: i32, %arg1: memref<128x64xf32, #tpu.memory_space<vmem>>, %arg2: memref<1x64xf32, #tpu.memory_space<vmem>>, %arg3: memref<1x64xf32, #tpu.memory_space<vmem>>, %arg4: memref<64x48xbf16, #tpu.memory_space<vmem>>, %arg5: memref<128x48xf32, #tpu.memory_space<vmem>>) attributes {dimension_semantics = [#tpu.dimension_semantics<parallel>], iteration_bounds = array<i64: 1>, scalar_prefetch = 0 : i64, scratch_operands = 0 : i64, tpu.core_type = #tpu.core_type<tc>, window_params = [{transform_indices = @transform_0, window_bounds = array<i64: 128, 64>}, {pipeline_mode = #tpu.pipeline_mode<synchronous>, transform_indices = @transform_1, window_bounds = array<i64: 1, 64>}, {pipeline_mode = #tpu.pipeline_mode<synchronous>, transform_indices = @transform_2, window_bounds = array<i64: 1, 64>}, {pipeline_mode = #tpu.pipeline_mode<synchronous>, transform_indices = @transform_3, window_bounds = array<i64: 64, 48>}, {transform_indices = @transform_4, window_bounds = array<i64: 128, 48>}]} {
    %c0 = arith.constant 0 : index
    %c0_0 = arith.constant 0 : index
    %0 = vector.load %arg1[%c0, %c0_0] : memref<128x64xf32, #tpu.memory_space<vmem>>, vector<128x64xf32>
    %cst = arith.constant dense<0.000000e+00> : vector<128xf32>
    %1 = vector.multi_reduction <add>, %0, %cst [1] : vector<128x64xf32> to vector<128xf32>
    %2 = vector.shape_cast %1 : vector<128xf32> to vector<128x1xf32>
    %cst_1 = arith.constant 6.400000e+01 : f32
    %3 = vector.broadcast %cst_1 : f32 to vector<128x1xf32>
    %4 = arith.divf %2, %3 : vector<128x1xf32>
    %5 = vector.broadcast %4 : vector<128x1xf32> to vector<128x64xf32>
    %6 = arith.subf %0, %5 : vector<128x64xf32>
    %7 = arith.mulf %6, %6 : vector<128x64xf32>
    %cst_2 = arith.constant dense<0.000000e+00> : vector<128xf32>
    %8 = vector.multi_reduction <add>, %7, %cst_2 [1] : vector<128x64xf32> to vector<128xf32>
    %9 = vector.shape_cast %8 : vector<128xf32> to vector<128x1xf32>
    %cst_3 = arith.constant 6.400000e+01 : f32
    %10 = vector.broadcast %cst_3 : f32 to vector<128x1xf32>
    %11 = arith.divf %9, %10 : vector<128x1xf32>
    %cst_4 = arith.constant 9.99999974E-6 : f32
    %12 = vector.broadcast %cst_4 : f32 to vector<128x1xf32>
    %13 = arith.addf %11, %12 : vector<128x1xf32>
    %14 = math.rsqrt %13 : vector<128x1xf32>
    %15 = vector.broadcast %14 : vector<128x1xf32> to vector<128x64xf32>
    %16 = arith.mulf %6, %15 : vector<128x64xf32>
    %c0_5 = arith.constant 0 : index
    %c0_6 = arith.constant 0 : index
    %17 = vector.load %arg2[%c0_5, %c0_6] : memref<1x64xf32, #tpu.memory_space<vmem>>, vector<1x64xf32>
    %18 = vector.broadcast %17 : vector<1x64xf32> to vector<128x64xf32>
    %19 = arith.mulf %16, %18 : vector<128x64xf32>
    %c0_7 = arith.constant 0 : index
    %c0_8 = arith.constant 0 : index
    %20 = vector.load %arg3[%c0_7, %c0_8] : memref<1x64xf32, #tpu.memory_space<vmem>>, vector<1x64xf32>
    %21 = vector.broadcast %20 : vector<1x64xf32> to vector<128x64xf32>
    %22 = arith.addf %19, %21 : vector<128x64xf32>
    %23 = arith.truncf %22 : vector<128x64xf32> to vector<128x64xbf16>
    %c0_9 = arith.constant 0 : index
    %c0_10 = arith.constant 0 : index
    %24 = vector.load %arg4[%c0_9, %c0_10] : memref<64x48xbf16, #tpu.memory_space<vmem>>, vector<64x48xbf16>
    %cst_11 = arith.constant dense<0.000000e+00> : vector<128x48xf32>
    %25 = tpu.matmul %23, %24, %cst_11 {dimension_numbers = #tpu.dot_dimension_numbers<[1], [0], [0], [1], [0, 0, 1, 1], [], []>} : vector<128x64xbf16>, vector<64x48xbf16>, vector<128x48xf32> -> vector<128x48xf32>
    %c0_12 = arith.constant 0 : index
    %c0_13 = arith.constant 0 : index
    %26 = vector.load %arg5[%c0_12, %c0_13] : memref<128x48xf32, #tpu.memory_space<vmem>>, vector<128x48xf32>
    tpu.vector_store %arg5[%c0_12, %c0_13], %25 {strides = array<i32>} : memref<128x48xf32, #tpu.memory_space<vmem>>, vector<128x48xf32>,
    return
  }
  func.func @transform_0(%arg0: i32) -> (i32, i32) {
    %c0_i32 = arith.constant 0 : i32
    %c0_i32_0 = arith.constant 0 : i32
    return %arg0, %c0_i32 : i32, i32
  }
  func.func @transform_1(%arg0: i32) -> (i32, i32) {
    %c0_i32 = arith.constant 0 : i32
    %c0_i32_0 = arith.constant 0 : i32
    %c0_i32_1 = arith.constant 0 : i32
    return %c0_i32, %c0_i32_0 : i32, i32
  }
  func.func @transform_2(%arg0: i32) -> (i32, i32) {
    %c0_i32 = arith.constant 0 : i32
    %c0_i32_0 = arith.constant 0 : i32
    %c0_i32_1 = arith.constant 0 : i32
    return %c0_i32, %c0_i32_0 : i32, i32
  }
  func.func @transform_3(%arg0: i32) -> (i32, i32) {
    %c0_i32 = arith.constant 0 : i32
    %c0_i32_0 = arith.constant 0 : i32
    %c0_i32_1 = arith.constant 0 : i32
    return %c0_i32, %c0_i32_0 : i32, i32
  }
  func.func @transform_4(%arg0: i32) -> (i32, i32) {
    %c0_i32 = arith.constant 0 : i32
    %c0_i32_0 = arith.constant 0 : i32
    return %arg0, %c0_i32 : i32, i32
  }
}

module attributes {stable_mosaic.version = 11 : i64} {
  func.func @_attn_kernel(%arg0: i32, %arg1: memref<128x16xf32, #tpu.memory_space<vmem>>, %arg2: memref<128x144xbf16, #tpu.memory_space<vmem>>, %arg3: memref<128x144xbf16, #tpu.memory_space<vmem>>, %arg4: memref<128x64xf32, #tpu.memory_space<vmem>>, %arg5: memref<16x36xf32, #tpu.memory_space<vmem>>, %arg6: memref<144x36xf32, #tpu.memory_space<vmem>>, %arg7: memref<36x144xf32, #tpu.memory_space<vmem>>, %arg8: memref<36x36xf32, #tpu.memory_space<vmem>>, %arg9: memref<64x16xf32, #tpu.memory_space<vmem>>, %arg10: memref<1x16xf32, #tpu.memory_space<vmem>>, %arg11: memref<144x16xf32, #tpu.memory_space<vmem>>, %arg12: memref<128x16xf32, #tpu.memory_space<vmem>>) attributes {dimension_semantics = [#tpu.dimension_semantics<parallel>], iteration_bounds = array<i64: 1>, scalar_prefetch = 0 : i64, scratch_operands = 0 : i64, tpu.core_type = #tpu.core_type<tc>, window_params = [{transform_indices = @transform_0, window_bounds = array<i64: 128, 16>}, {transform_indices = @transform_1, window_bounds = array<i64: 128, 144>}, {transform_indices = @transform_2, window_bounds = array<i64: 128, 144>}, {transform_indices = @transform_3, window_bounds = array<i64: 128, 64>}, {pipeline_mode = #tpu.pipeline_mode<synchronous>, transform_indices = @transform_4, window_bounds = array<i64: 16, 36>}, {pipeline_mode = #tpu.pipeline_mode<synchronous>, transform_indices = @transform_5, window_bounds = array<i64: 144, 36>}, {pipeline_mode = #tpu.pipeline_mode<synchronous>, transform_indices = @transform_6, window_bounds = array<i64: 36, 144>}, {pipeline_mode = #tpu.pipeline_mode<synchronous>, transform_indices = @transform_7, window_bounds = array<i64: 36, 36>}, {pipeline_mode = #tpu.pipeline_mode<synchronous>, transform_indices = @transform_8, window_bounds = array<i64: 64, 16>}, {pipeline_mode = #tpu.pipeline_mode<synchronous>, transform_indices = @transform_9, window_bounds = array<i64: 1, 16>}, {pipeline_mode = #tpu.pipeline_mode<synchronous>, transform_indices = @transform_10, window_bounds = array<i64: 144, 16>}, {transform_indices = @transform_11, window_bounds = array<i64: 128, 16>}]} {
    %c0 = arith.constant 0 : index
    %c0_0 = arith.constant 0 : index
    %0 = vector.load %arg1[%c0, %c0_0] : memref<128x16xf32, #tpu.memory_space<vmem>>, vector<128x16xf32>
    %c0_1 = arith.constant 0 : index
    %c0_2 = arith.constant 0 : index
    %1 = vector.load %arg4[%c0_1, %c0_2] : memref<128x64xf32, #tpu.memory_space<vmem>>, vector<128x64xf32>
    %c0_3 = arith.constant 0 : index
    %c0_4 = arith.constant 0 : index
    %2 = vector.load %arg9[%c0_3, %c0_4] : memref<64x16xf32, #tpu.memory_space<vmem>>, vector<64x16xf32>
    %cst = arith.constant dense<0.000000e+00> : vector<128x16xf32>
    %3 = tpu.matmul %1, %2, %cst {dimension_numbers = #tpu.dot_dimension_numbers<[1], [0], [0], [1], [0, 0, 1, 1], [], []>} : vector<128x64xf32>, vector<64x16xf32>, vector<128x16xf32> -> vector<128x16xf32>
    %c0_5 = arith.constant 0 : index
    %c0_6 = arith.constant 0 : index
    %4 = vector.load %arg10[%c0_5, %c0_6] : memref<1x16xf32, #tpu.memory_space<vmem>>, vector<1x16xf32>
    %5 = vector.broadcast %4 : vector<1x16xf32> to vector<128x16xf32>
    %6 = arith.addf %3, %5 : vector<128x16xf32>
    %c0_7 = arith.constant 0 : index
    %c0_8 = arith.constant 0 : index
    %7 = vector.load %arg5[%c0_7, %c0_8] : memref<16x36xf32, #tpu.memory_space<vmem>>, vector<16x36xf32>
    %cst_9 = arith.constant dense<0.000000e+00> : vector<128x36xf32>
    %8 = tpu.matmul %0, %7, %cst_9 {dimension_numbers = #tpu.dot_dimension_numbers<[1], [0], [0], [1], [0, 0, 1, 1], [], []>} : vector<128x16xf32>, vector<16x36xf32>, vector<128x36xf32> -> vector<128x36xf32>
    %9 = tpu.concatenate %0, %0, %0, %0, %0, %0, %0, %0, %0 in 1 : vector<128x16xf32>, vector<128x16xf32>, vector<128x16xf32>, vector<128x16xf32>, vector<128x16xf32>, vector<128x16xf32>, vector<128x16xf32>, vector<128x16xf32>, vector<128x16xf32> -> vector<128x144xf32>
    %c0_10 = arith.constant 0 : index
    %c0_11 = arith.constant 0 : index
    %10 = vector.load %arg6[%c0_10, %c0_11] : memref<144x36xf32, #tpu.memory_space<vmem>>, vector<144x36xf32>
    %c0_12 = arith.constant 0 : index
    %c0_13 = arith.constant 0 : index
    %11 = vector.load %arg7[%c0_12, %c0_13] : memref<36x144xf32, #tpu.memory_space<vmem>>, vector<36x144xf32>
    %c0_14 = arith.constant 0 : index
    %c0_15 = arith.constant 0 : index
    %12 = vector.load %arg8[%c0_14, %c0_15] : memref<36x36xf32, #tpu.memory_space<vmem>>, vector<36x36xf32>
    %c0_16 = arith.constant 0 : index
    %c0_17 = arith.constant 0 : index
    %13 = vector.load %arg11[%c0_16, %c0_17] : memref<144x16xf32, #tpu.memory_space<vmem>>, vector<144x16xf32>
    %c0_18 = arith.constant 0 : index
    %c0_19 = arith.constant 0 : index
    %14 = vector.load %arg2[%c0_18, %c0_19] : memref<128x144xbf16, #tpu.memory_space<vmem>>, vector<128x144xbf16>
    %15 = arith.extf %14 : vector<128x144xbf16> to vector<128x144xf32>
    %c0_20 = arith.constant 0 : index
    %c0_21 = arith.constant 0 : index
    %16 = vector.load %arg3[%c0_20, %c0_21] : memref<128x144xbf16, #tpu.memory_space<vmem>>, vector<128x144xbf16>
    %17 = arith.extf %16 : vector<128x144xbf16> to vector<128x144xf32>
    %18 = arith.mulf %15, %9 : vector<128x144xf32>
    %cst_22 = arith.constant dense<0.000000e+00> : vector<128x36xf32>
    %19 = tpu.matmul %18, %10, %cst_22 {dimension_numbers = #tpu.dot_dimension_numbers<[1], [0], [0], [1], [0, 0, 1, 1], [], []>} : vector<128x144xf32>, vector<144x36xf32>, vector<128x36xf32> -> vector<128x36xf32>
    %20 = arith.addf %19, %8 : vector<128x36xf32>
    %21 = vector.extract_strided_slice %20 {offsets = [0, 0], sizes = [128, 9], strides = [1, 1]} : vector<128x36xf32> to vector<128x9xf32>
    %cst_23 = arith.constant dense<0xFF800000> : vector<128xf32>
    %22 = vector.multi_reduction <maximumf>, %21, %cst_23 [1] : vector<128x9xf32> to vector<128xf32>
    %23 = vector.shape_cast %22 : vector<128xf32> to vector<128x1xf32>
    %24 = vector.shape_cast %23 : vector<128x1xf32> to vector<128x1xf32>
    %25 = vector.broadcast %24 : vector<128x1xf32> to vector<128x9xf32>
    %26 = vector.extract_strided_slice %20 {offsets = [0, 9], sizes = [128, 9], strides = [1, 1]} : vector<128x36xf32> to vector<128x9xf32>
    %cst_24 = arith.constant dense<0xFF800000> : vector<128xf32>
    %27 = vector.multi_reduction <maximumf>, %26, %cst_24 [1] : vector<128x9xf32> to vector<128xf32>
    %28 = vector.shape_cast %27 : vector<128xf32> to vector<128x1xf32>
    %29 = vector.shape_cast %28 : vector<128x1xf32> to vector<128x1xf32>
    %30 = vector.broadcast %29 : vector<128x1xf32> to vector<128x9xf32>
    %31 = vector.extract_strided_slice %20 {offsets = [0, 18], sizes = [128, 9], strides = [1, 1]} : vector<128x36xf32> to vector<128x9xf32>
    %cst_25 = arith.constant dense<0xFF800000> : vector<128xf32>
    %32 = vector.multi_reduction <maximumf>, %31, %cst_25 [1] : vector<128x9xf32> to vector<128xf32>
    %33 = vector.shape_cast %32 : vector<128xf32> to vector<128x1xf32>
    %34 = vector.shape_cast %33 : vector<128x1xf32> to vector<128x1xf32>
    %35 = vector.broadcast %34 : vector<128x1xf32> to vector<128x9xf32>
    %36 = vector.extract_strided_slice %20 {offsets = [0, 27], sizes = [128, 9], strides = [1, 1]} : vector<128x36xf32> to vector<128x9xf32>
    %cst_26 = arith.constant dense<0xFF800000> : vector<128xf32>
    %37 = vector.multi_reduction <maximumf>, %36, %cst_26 [1] : vector<128x9xf32> to vector<128xf32>
    %38 = vector.shape_cast %37 : vector<128xf32> to vector<128x1xf32>
    %39 = vector.shape_cast %38 : vector<128x1xf32> to vector<128x1xf32>
    %40 = vector.broadcast %39 : vector<128x1xf32> to vector<128x9xf32>
    %41 = tpu.concatenate %25, %30, %35, %40 in 1 : vector<128x9xf32>, vector<128x9xf32>, vector<128x9xf32>, vector<128x9xf32> -> vector<128x36xf32>
    %42 = arith.subf %20, %41 : vector<128x36xf32>
    %43 = math.exp %42 : vector<128x36xf32>
    %cst_27 = arith.constant dense<0.000000e+00> : vector<128x36xf32>
    %44 = tpu.matmul %43, %12, %cst_27 {dimension_numbers = #tpu.dot_dimension_numbers<[1], [0], [0], [1], [0, 0, 1, 1], [], []>} : vector<128x36xf32>, vector<36x36xf32>, vector<128x36xf32> -> vector<128x36xf32>
    %45 = tpu.reciprocal %44 {approx = true} : vector<128x36xf32> -> vector<128x36xf32>
    %46 = arith.mulf %43, %45 : vector<128x36xf32>
    %cst_28 = arith.constant dense<0.000000e+00> : vector<128x144xf32>
    %47 = tpu.matmul %46, %11, %cst_28 {dimension_numbers = #tpu.dot_dimension_numbers<[1], [0], [0], [1], [0, 0, 1, 1], [], []>} : vector<128x36xf32>, vector<36x144xf32>, vector<128x144xf32> -> vector<128x144xf32>
    %48 = arith.mulf %17, %47 : vector<128x144xf32>
    %cst_29 = arith.constant dense<0.000000e+00> : vector<128x16xf32>
    %49 = tpu.matmul %48, %13, %cst_29 {dimension_numbers = #tpu.dot_dimension_numbers<[1], [0], [0], [1], [0, 0, 1, 1], [], []>} : vector<128x144xf32>, vector<144x16xf32>, vector<128x16xf32> -> vector<128x16xf32>
    %50 = arith.addf %49, %6 : vector<128x16xf32>
    %c0_30 = arith.constant 0 : index
    %c0_31 = arith.constant 0 : index
    %51 = vector.load %arg12[%c0_30, %c0_31] : memref<128x16xf32, #tpu.memory_space<vmem>>, vector<128x16xf32>
    tpu.vector_store %arg12[%c0_30, %c0_31], %50 {strides = array<i32>} : memref<128x16xf32, #tpu.memory_space<vmem>>, vector<128x16xf32>,
    return
  }
  func.func @transform_0(%arg0: i32) -> (i32, i32) {
    %c0_i32 = arith.constant 0 : i32
    %c0_i32_0 = arith.constant 0 : i32
    return %arg0, %c0_i32 : i32, i32
  }
  func.func @transform_1(%arg0: i32) -> (i32, i32) {
    %c0_i32 = arith.constant 0 : i32
    %c0_i32_0 = arith.constant 0 : i32
    return %arg0, %c0_i32 : i32, i32
  }
  func.func @transform_2(%arg0: i32) -> (i32, i32) {
    %c0_i32 = arith.constant 0 : i32
    %c0_i32_0 = arith.constant 0 : i32
    return %arg0, %c0_i32 : i32, i32
  }
  func.func @transform_3(%arg0: i32) -> (i32, i32) {
    %c0_i32 = arith.constant 0 : i32
    %c0_i32_0 = arith.constant 0 : i32
    return %arg0, %c0_i32 : i32, i32
  }
  func.func @transform_4(%arg0: i32) -> (i32, i32) {
    %c0_i32 = arith.constant 0 : i32
    %c0_i32_0 = arith.constant 0 : i32
    %c0_i32_1 = arith.constant 0 : i32
    return %c0_i32, %c0_i32_0 : i32, i32
  }
  func.func @transform_5(%arg0: i32) -> (i32, i32) {
    %c0_i32 = arith.constant 0 : i32
    %c0_i32_0 = arith.constant 0 : i32
    %c0_i32_1 = arith.constant 0 : i32
    return %c0_i32, %c0_i32_0 : i32, i32
  }
  func.func @transform_6(%arg0: i32) -> (i32, i32) {
    %c0_i32 = arith.constant 0 : i32
    %c0_i32_0 = arith.constant 0 : i32
    %c0_i32_1 = arith.constant 0 : i32
    return %c0_i32, %c0_i32_0 : i32, i32
  }
  func.func @transform_7(%arg0: i32) -> (i32, i32) {
    %c0_i32 = arith.constant 0 : i32
    %c0_i32_0 = arith.constant 0 : i32
    %c0_i32_1 = arith.constant 0 : i32
    return %c0_i32, %c0_i32_0 : i32, i32
  }
  func.func @transform_8(%arg0: i32) -> (i32, i32) {
    %c0_i32 = arith.constant 0 : i32
    %c0_i32_0 = arith.constant 0 : i32
    %c0_i32_1 = arith.constant 0 : i32
    return %c0_i32, %c0_i32_0 : i32, i32
  }
  func.func @transform_9(%arg0: i32) -> (i32, i32) {
    %c0_i32 = arith.constant 0 : i32
    %c0_i32_0 = arith.constant 0 : i32
    %c0_i32_1 = arith.constant 0 : i32
    return %c0_i32, %c0_i32_0 : i32, i32
  }
  func.func @transform_10(%arg0: i32) -> (i32, i32) {
    %c0_i32 = arith.constant 0 : i32
    %c0_i32_0 = arith.constant 0 : i32
    %c0_i32_1 = arith.constant 0 : i32
    return %c0_i32, %c0_i32_0 : i32, i32
  }
  func.func @transform_11(%arg0: i32) -> (i32, i32) {
    %c0_i32 = arith.constant 0 : i32
    %c0_i32_0 = arith.constant 0 : i32
    return %arg0, %c0_i32 : i32, i32
  }
}

</mosaic_0001>

<llo_original>
// kernel: baca_forward.2
$region0: #{baca_forward.2}
  #allocation0 [shape = 'u32[]', space=smem, size = 0x4, offset = 0x4, fixed_abs, tag = 'smem constant byte address 0x4 - core index']
  #allocation1 [shape = 'u32[144,128]{1,0:T(1,128)}', space=vmem, size = 0x12000, scoped, tag = 'internal scratch']
  %s0 = inlined_call_operand.hbm [shape: f32[128,64], index: 0, kind: input, shape index: {}]
  %s1 = inlined_call_operand.hbm [shape: f32[1,64], index: 1, kind: input, shape index: {}]
  %s2 = inlined_call_operand.hbm [shape: f32[1,64], index: 2, kind: input, shape index: {}]
  %s3 = inlined_call_operand.vmem [shape: bf16[64,48], index: 3, kind: input, shape index: {}]
  %s4 = inlined_call_operand.vmem [shape: f32[128,48], index: 4, kind: output, shape index: {}]
  %s5 = sld [smem:[#allocation0]]
  $region38: #{baca_forward.2} parent=0
    _
  %s7 = ssub.s32 1, %s5
  %s8 = scalar_select 0, %s7, %s5
  $region1: #{baca_forward.2} parent=0
    #allocation2 [shape = 'u8[65536]{0}', space=vmem, size = 0x10000, scoped, tag = 'input window, operand 0, single buffered']
    #allocation3 [shape = 's32[1]{0}', space=sflag, size = 0x4, scoped, tag = 'scoped memory for baca_forward.2']
    #allocation4 [shape = 'u8[512]{0}', space=vmem, size = 0x400, scoped, tag = 'input window, operand 1, single buffered']
    #allocation5 [shape = 's32[1]{0}', space=sflag, size = 0x4, scoped, tag = 'scoped memory for baca_forward.2']
    #allocation6 [shape = 'u8[512]{0}', space=vmem, size = 0x400, scoped, tag = 'input window, operand 2, single buffered']
    %9 = vsyncpa [#allocation3], 0
    %10 = vsyncpa [#allocation5], 0
    // Predicated region
    $region2: #{baca_forward.2} parent=1 // pred_check
      _
    $region3: #{baca_forward.2} parent=1 // pred_check_branch
      %12 = sbr.rel (0) target = $region5
    $region4: #{baca_forward.2} parent=1 // pred_region
      %s14 = ssub.s32 2048, 2048
      %15 = vsyncadd [#allocation3], %s14
      %s16 = sshll.u32 [#allocation2], 4
      %s17 = int_to_ptr.vmem [resolvable:$true] %s16
      %22 = dma.hbm_to_vmem [thread:$0]  %s0, 2048, %s17, [#allocation3], 128, 128, 8
    $region5: #{baca_forward.2} parent=1 // pred_fallthru
      _
    // Predicated region
    $region6: #{baca_forward.2} parent=1 // pred_check
      _
    $region7: #{baca_forward.2} parent=1 // pred_check_branch
      %24 = sbr.rel (0) target = $region9
    $region8: #{baca_forward.2} parent=1 // pred_region
      %s26 = ssub.s32 16, 16
      %27 = vsyncadd [#allocation5], %s26
      %s29 = sshll.u32 [#allocation4], 4
      %s30 = int_to_ptr.vmem [resolvable:$true] %s29
      %32 = dma.hbm_to_vmem [thread:$0]  %s1, 16, %s30, [#allocation5]
    $region9: #{baca_forward.2} parent=1 // pred_fallthru
      _
    // Predicated region
    $region10: #{baca_forward.2} parent=1 // pred_check
      _
    $region11: #{baca_forward.2} parent=1 // pred_check_branch
      %34 = sbr.rel (0) target = $region13
    $region12: #{baca_forward.2} parent=1 // pred_region
      %s36 = ssub.s32 16, 16
      %37 = vsyncadd [#allocation5], %s36
      %s39 = sshll.u32 [#allocation6], 4
      %s40 = int_to_ptr.vmem [resolvable:$true] %s39
      %42 = dma.hbm_to_vmem [thread:$0]  %s2, 16, %s40, [#allocation5]
    $region13: #{baca_forward.2} parent=1 // pred_fallthru
      _
    // Predicated region
    $region14: #{baca_forward.2} parent=1 // pred_check
      _
    $region15: #{baca_forward.2} parent=1 // pred_check_branch
      %44 = sbr.rel (0) target = $region17
    $region16: #{baca_forward.2} parent=1 // pred_region
      _
    $region17: #{baca_forward.2} parent=1 // pred_fallthru
      _
    // Predicated region
    $region18: #{baca_forward.2} parent=1 // pred_check
      _
    $region19: #{baca_forward.2} parent=1 // pred_check_branch
      %46 = sbr.rel (0) target = $region21
    $region20: #{baca_forward.2} parent=1 // pred_region
      %47 = dma.done [#allocation3], 2048
    $region21: #{baca_forward.2} parent=1 // pred_fallthru
      _
    // Predicated region
    $region22: #{baca_forward.2} parent=1 // pred_check
      _
    $region23: #{baca_forward.2} parent=1 // pred_check_branch
      %49 = sbr.rel (0) target = $region25
    $region24: #{baca_forward.2} parent=1 // pred_region
      %50 = dma.done [#allocation5], 16
    $region25: #{baca_forward.2} parent=1 // pred_fallthru
      _
    // Predicated region
    $region26: #{baca_forward.2} parent=1 // pred_check
      _
    $region27: #{baca_forward.2} parent=1 // pred_check_branch
      %52 = sbr.rel (0) target = $region29
    $region28: #{baca_forward.2} parent=1 // pred_region
      %53 = dma.done [#allocation5], 16
    $region29: #{baca_forward.2} parent=1 // pred_fallthru
      _
    %v55 = vld [vmem:[#allocation2] sm:$0xff]
    %v56 = vld [vmem:[#allocation2 + $0x8] sm:$0xff]
    %v57 = vld [vmem:[#allocation2 + $0x10] sm:$0xff]
    %v58 = vld [vmem:[#allocation2 + $0x18] sm:$0xff]
    %v59 = vld [vmem:[#allocation2 + $0x20] sm:$0xff]
    %v60 = vld [vmem:[#allocation2 + $0x28] sm:$0xff]
    %v61 = vld [vmem:[#allocation2 + $0x30] sm:$0xff]
    %v62 = vld [vmem:[#allocation2 + $0x38] sm:$0xff]
    %v63 = vld [vmem:[#allocation2 + $0x40] sm:$0xff]
    %v64 = vld [vmem:[#allocation2 + $0x48] sm:$0xff]
    %v65 = vld [vmem:[#allocation2 + $0x50] sm:$0xff]
    %v66 = vld [vmem:[#allocation2 + $0x58] sm:$0xff]
    %v67 = vld [vmem:[#allocation2 + $0x60] sm:$0xff]
    %v68 = vld [vmem:[#allocation2 + $0x68] sm:$0xff]
    %v69 = vld [vmem:[#allocation2 + $0x70] sm:$0xff]
    %v70 = vld [vmem:[#allocation2 + $0x78] sm:$0xff]
    %vm71 = vcmask 523264
    %v72 = vsel %vm71, %v55, 0.0
    %73 = vadd.xlane.f32.xlu0 %v72
    %v74 = vpop.xlane.xlu0 %73
    %v75 = vsel %vm71, %v56, 0.0
    %76 = vadd.xlane.f32.xlu0 %v75
    %v77 = vpop.xlane.xlu0 %76
    %v78 = vsel %vm71, %v57, 0.0
    %79 = vadd.xlane.f32.xlu0 %v78
    %v80 = vpop.xlane.xlu0 %79
    %v81 = vsel %vm71, %v58, 0.0
    %82 = vadd.xlane.f32.xlu0 %v81
    %v83 = vpop.xlane.xlu0 %82
    %v84 = vsel %vm71, %v59, 0.0
    %85 = vadd.xlane.f32.xlu0 %v84
    %v86 = vpop.xlane.xlu0 %85
    %v87 = vsel %vm71, %v60, 0.0
    %88 = vadd.xlane.f32.xlu0 %v87
    %v89 = vpop.xlane.xlu0 %88
    %v90 = vsel %vm71, %v61, 0.0
    %91 = vadd.xlane.f32.xlu0 %v90
    %v92 = vpop.xlane.xlu0 %91
    %v93 = vsel %vm71, %v62, 0.0
    %94 = vadd.xlane.f32.xlu0 %v93
    %v95 = vpop.xlane.xlu0 %94
    %v96 = vsel %vm71, %v63, 0.0
    %97 = vadd.xlane.f32.xlu0 %v96
    %v98 = vpop.xlane.xlu0 %97
    %v99 = vsel %vm71, %v64, 0.0
    %100 = vadd.xlane.f32.xlu0 %v99
    %v101 = vpop.xlane.xlu0 %100
    %v102 = vsel %vm71, %v65, 0.0
    %103 = vadd.xlane.f32.xlu0 %v102
    %v104 = vpop.xlane.xlu0 %103
    %v105 = vsel %vm71, %v66, 0.0
    %106 = vadd.xlane.f32.xlu0 %v105
    %v107 = vpop.xlane.xlu0 %106
    %v108 = vsel %vm71, %v67, 0.0
    %109 = vadd.xlane.f32.xlu0 %v108
    %v110 = vpop.xlane.xlu0 %109
    %v111 = vsel %vm71, %v68, 0.0
    %112 = vadd.xlane.f32.xlu0 %v111
    %v113 = vpop.xlane.xlu0 %112
    %v114 = vsel %vm71, %v69, 0.0
    %115 = vadd.xlane.f32.xlu0 %v114
    %v116 = vpop.xlane.xlu0 %115
    %v117 = vsel %vm71, %v70, 0.0
    %118 = vadd.xlane.f32.xlu0 %v117
    %v119 = vpop.xlane.xlu0 %118
    %v120 = vrcp.pop 64.0
    %v121 = vmul.f32 %v74, %v120
    %v122 = vmul.f32 %v77, %v120
    %v123 = vmul.f32 %v80, %v120
    %v124 = vmul.f32 %v83, %v120
    %v125 = vmul.f32 %v86, %v120
    %v126 = vmul.f32 %v89, %v120
    %v127 = vmul.f32 %v92, %v120
    %v128 = vmul.f32 %v95, %v120
    %v129 = vmul.f32 %v98, %v120
    %v130 = vmul.f32 %v101, %v120
    %v131 = vmul.f32 %v104, %v120
    %v132 = vmul.f32 %v107, %v120
    %v133 = vmul.f32 %v110, %v120
    %v134 = vmul.f32 %v113, %v120
    %v135 = vmul.f32 %v116, %v120
    %v136 = vmul.f32 %v119, %v120
    %v137 = vsub.f32 %v55, %v121
    %v138 = vsub.f32 %v56, %v122
    %v139 = vsub.f32 %v57, %v123
    %v140 = vsub.f32 %v58, %v124
    %v141 = vsub.f32 %v59, %v125
    %v142 = vsub.f32 %v60, %v126
    %v143 = vsub.f32 %v61, %v127
    %v144 = vsub.f32 %v62, %v128
    %v145 = vsub.f32 %v63, %v129
    %v146 = vsub.f32 %v64, %v130
    %v147 = vsub.f32 %v65, %v131
    %v148 = vsub.f32 %v66, %v132
    %v149 = vsub.f32 %v67, %v133
    %v150 = vsub.f32 %v68, %v134
    %v151 = vsub.f32 %v69, %v135
    %v152 = vsub.f32 %v70, %v136
    %v153 = vmul.f32 %v137, %v137
    %v154 = vmul.f32 %v138, %v138
    %v155 = vmul.f32 %v139, %v139
    %v156 = vmul.f32 %v140, %v140
    %v157 = vmul.f32 %v141, %v141
    %v158 = vmul.f32 %v142, %v142
    %v159 = vmul.f32 %v143, %v143
    %v160 = vmul.f32 %v144, %v144
    %v161 = vmul.f32 %v145, %v145
    %v162 = vmul.f32 %v146, %v146
    %v163 = vmul.f32 %v147, %v147
    %v164 = vmul.f32 %v148, %v148
    %v165 = vmul.f32 %v149, %v149
    %v166 = vmul.f32 %v150, %v150
    %v167 = vmul.f32 %v151, %v151
    %v168 = vmul.f32 %v152, %v152
    %v169 = vsel %vm71, %v153, 0.0
    %170 = vadd.xlane.f32.xlu0 %v169
    %v171 = vpop.xlane.xlu0 %170
    %v172 = vsel %vm71, %v154, 0.0
    %173 = vadd.xlane.f32.xlu0 %v172
    %v174 = vpop.xlane.xlu0 %173
    %v175 = vsel %vm71, %v155, 0.0
    %176 = vadd.xlane.f32.xlu0 %v175
    %v177 = vpop.xlane.xlu0 %176
    %v178 = vsel %vm71, %v156, 0.0
    %179 = vadd.xlane.f32.xlu0 %v178
    %v180 = vpop.xlane.xlu0 %179
    %v181 = vsel %vm71, %v157, 0.0
    %182 = vadd.xlane.f32.xlu0 %v181
    %v183 = vpop.xlane.xlu0 %182
    %v184 = vsel %vm71, %v158, 0.0
    %185 = vadd.xlane.f32.xlu0 %v184
    %v186 = vpop.xlane.xlu0 %185
    %v187 = vsel %vm71, %v159, 0.0
    %188 = vadd.xlane.f32.xlu0 %v187
    %v189 = vpop.xlane.xlu0 %188
    %v190 = vsel %vm71, %v160, 0.0
    %191 = vadd.xlane.f32.xlu0 %v190
    %v192 = vpop.xlane.xlu0 %191
    %v193 = vsel %vm71, %v161, 0.0
    %194 = vadd.xlane.f32.xlu0 %v193
    %v195 = vpop.xlane.xlu0 %194
    %v196 = vsel %vm71, %v162, 0.0
    %197 = vadd.xlane.f32.xlu0 %v196
    %v198 = vpop.xlane.xlu0 %197
    %v199 = vsel %vm71, %v163, 0.0
    %200 = vadd.xlane.f32.xlu0 %v199
    %v201 = vpop.xlane.xlu0 %200
    %v202 = vsel %vm71, %v164, 0.0
    %203 = vadd.xlane.f32.xlu0 %v202
    %v204 = vpop.xlane.xlu0 %203
    %v205 = vsel %vm71, %v165, 0.0
    %206 = vadd.xlane.f32.xlu0 %v205
    %v207 = vpop.xlane.xlu0 %206
    %v208 = vsel %vm71, %v166, 0.0
    %209 = vadd.xlane.f32.xlu0 %v208
    %v210 = vpop.xlane.xlu0 %209
    %v211 = vsel %vm71, %v167, 0.0
    %212 = vadd.xlane.f32.xlu0 %v211
    %v213 = vpop.xlane.xlu0 %212
    %v214 = vsel %vm71, %v168, 0.0
    %215 = vadd.xlane.f32.xlu0 %v214
    %v216 = vpop.xlane.xlu0 %215
    %v217 = vmul.f32 %v171, %v120
    %v218 = vmul.f32 %v174, %v120
    %v219 = vmul.f32 %v177, %v120
    %v220 = vmul.f32 %v180, %v120
    %v221 = vmul.f32 %v183, %v120
    %v222 = vmul.f32 %v186, %v120
    %v223 = vmul.f32 %v189, %v120
    %v224 = vmul.f32 %v192, %v120
    %v225 = vmul.f32 %v195, %v120
    %v226 = vmul.f32 %v198, %v120
    %v227 = vmul.f32 %v201, %v120
    %v228 = vmul.f32 %v204, %v120
    %v229 = vmul.f32 %v207, %v120
    %v230 = vmul.f32 %v210, %v120
    %v231 = vmul.f32 %v213, %v120
    %v232 = vmul.f32 %v216, %v120
    %v233 = vadd.f32 %v217, 1e-05
    %v234 = vadd.f32 %v218, 1e-05
    %v235 = vadd.f32 %v219, 1e-05
    %v236 = vadd.f32 %v220, 1e-05
    %v237 = vadd.f32 %v221, 1e-05
    %v238 = vadd.f32 %v222, 1e-05
    %v239 = vadd.f32 %v223, 1e-05
    %v240 = vadd.f32 %v224, 1e-05
    %v241 = vadd.f32 %v225, 1e-05
    %v242 = vadd.f32 %v226, 1e-05
    %v243 = vadd.f32 %v227, 1e-05
    %v244 = vadd.f32 %v228, 1e-05
    %v245 = vadd.f32 %v229, 1e-05
    %v246 = vadd.f32 %v230, 1e-05
    %v247 = vadd.f32 %v231, 1e-05
    %v248 = vadd.f32 %v232, 1e-05
    %v249 = vrsqrt.pop %v233
    %v250 = vrsqrt.pop %v234
    %v251 = vrsqrt.pop %v235
    %v252 = vrsqrt.pop %v236
    %v253 = vrsqrt.pop %v237
    %v254 = vrsqrt.pop %v238
    %v255 = vrsqrt.pop %v239
    %v256 = vrsqrt.pop %v240
    %v257 = vrsqrt.pop %v241
    %v258 = vrsqrt.pop %v242
    %v259 = vrsqrt.pop %v243
    %v260 = vrsqrt.pop %v244
    %v261 = vrsqrt.pop %v245
    %v262 = vrsqrt.pop %v246
    %v263 = vrsqrt.pop %v247
    %v264 = vrsqrt.pop %v248
    %v265 = vmul.f32 %v137, %v249
    %v266 = vmul.f32 %v138, %v250
    %v267 = vmul.f32 %v139, %v251
    %v268 = vmul.f32 %v140, %v252
    %v269 = vmul.f32 %v141, %v253
    %v270 = vmul.f32 %v142, %v254
    %v271 = vmul.f32 %v143, %v255
    %v272 = vmul.f32 %v144, %v256
    %v273 = vmul.f32 %v145, %v257
    %v274 = vmul.f32 %v146, %v258
    %v275 = vmul.f32 %v147, %v259
    %v276 = vmul.f32 %v148, %v260
    %v277 = vmul.f32 %v149, %v261
    %v278 = vmul.f32 %v150, %v262
    %v279 = vmul.f32 %v151, %v263
    %v280 = vmul.f32 %v152, %v264
    %v281 = vld [vmem:[#allocation4] sm:$0x1]
    %v283 = vlaneseq
    %v284 = vshrl.u32 %v283, 7
    %v285 = vsub.s32 0, %v284
    %v286 = vrot.slane %v281, %v285
    %v288 = vmul.f32 %v265, %v286
    %v289 = vmul.f32 %v266, %v286
    %v290 = vmul.f32 %v267, %v286
    %v291 = vmul.f32 %v268, %v286
    %v292 = vmul.f32 %v269, %v286
    %v293 = vmul.f32 %v270, %v286
    %v294 = vmul.f32 %v271, %v286
    %v295 = vmul.f32 %v272, %v286
    %v296 = vmul.f32 %v273, %v286
    %v297 = vmul.f32 %v274, %v286
    %v298 = vmul.f32 %v275, %v286
    %v299 = vmul.f32 %v276, %v286
    %v300 = vmul.f32 %v277, %v286
    %v301 = vmul.f32 %v278, %v286
    %v302 = vmul.f32 %v279, %v286
    %v303 = vmul.f32 %v280, %v286
    %v304 = vld [vmem:[#allocation6] sm:$0x1]
    %v306 = vlaneseq
    %v307 = vshrl.u32 %v306, 7
    %v308 = vsub.s32 0, %v307
    %v309 = vrot.slane %v304, %v308
    %v311 = vadd.f32 %v288, %v309
    %v312 = vadd.f32 %v289, %v309
    %v313 = vadd.f32 %v290, %v309
    %v314 = vadd.f32 %v291, %v309
    %v315 = vadd.f32 %v292, %v309
    %v316 = vadd.f32 %v293, %v309
    %v317 = vadd.f32 %v294, %v309
    %v318 = vadd.f32 %v295, %v309
    %v319 = vadd.f32 %v296, %v309
    %v320 = vadd.f32 %v297, %v309
    %v321 = vadd.f32 %v298, %v309
    %v322 = vadd.f32 %v299, %v309
    %v323 = vadd.f32 %v300, %v309
    %v324 = vadd.f32 %v301, %v309
    %v325 = vadd.f32 %v302, %v309
    %v326 = vadd.f32 %v303, %v309
    %v327 = vpack.c.bf16 %v312, %v311
    %v328 = vpack.c.bf16 %v314, %v313
    %v329 = vpack.c.bf16 %v316, %v315
    %v330 = vpack.c.bf16 %v318, %v317
    %v331 = vpack.c.bf16 %v320, %v319
    %v332 = vpack.c.bf16 %v322, %v321
    %v333 = vpack.c.bf16 %v324, %v323
    %v334 = vpack.c.bf16 %v326, %v325
    %v335 = vld [vmem:[%s3] sm:$0xf]
    %v336 = vld [vmem:[%s3 + $0x4] sm:$0xf]
    %v337 = vld [vmem:[%s3 + $0x8] sm:$0xf]
    %v338 = vld [vmem:[%s3 + $0xc] sm:$0xf]
    %v339 = vld [vmem:[%s3 + $0x10] sm:$0xf]
    %v340 = vld [vmem:[%s3 + $0x14] sm:$0xf]
    %v341 = vld [vmem:[%s3 + $0x18] sm:$0xf]
    %v342 = vld [vmem:[%s3 + $0x1c] sm:$0xf]
    %v351 = vunpack.c.l.b16 %v335
    %v352 = vunpack.c.l.b16 %v336
    %v353 = vunpack.c.l.b16 %v337
    %v354 = vunpack.c.l.b16 %v338
    %v355 = vunpack.c.l.b16 %v339
    %v356 = vunpack.c.l.b16 %v340
    %v357 = vunpack.c.l.b16 %v341
    %v358 = vunpack.c.l.b16 %v342
    %v359 = vpack.c.b16 %v352, %v351
    %v360 = vpack.c.b16 %v354, %v353
    %v361 = vpack.c.b16 %v356, %v355
    %v362 = vpack.c.b16 %v358, %v357
    %v368 = vsel %vm71, %v327, 0
    %v371 = vsel %vm71, %v328, 0
    %v374 = vsel %vm71, %v329, 0
    %v377 = vsel %vm71, %v330, 0
    %v380 = vsel %vm71, %v331, 0
    %v383 = vsel %vm71, %v332, 0
    %v386 = vsel %vm71, %v333, 0
    %v389 = vsel %vm71, %v334, 0
    %391 = vmatprep.subr.bf16.mxu0 0
    %392 = vmatpush1.bf16.msra.mxu0 %v359
    %393 = vmatprep.subr.bf16.mxu0 0
    %394 = vmatpush1.bf16.msra.mxu0 %v360
    %395 = vmatprep.subr.bf16.mxu0 0
    %396 = vmatpush1.bf16.msra.mxu0 %v361
    %397 = vmatprep.subr.bf16.mxu0 0
    %398 = vmatpush1.bf16.msra.mxu0 %v362
    %399 = vmatprep.subr.bf16.mxu0 0
    %400 = vmatpush1.bf16.msra.mxu0 0
    %401 = vmatprep.subr.bf16.mxu0 0
    %402 = vmatpush1.bf16.msra.mxu0 0
    %403 = vmatprep.subr.bf16.mxu0 0
    %404 = vmatpush1.bf16.msra.mxu0 0
    %405 = vmatprep.subr.bf16.mxu0 0
    %406 = vmatpush1.bf16.msra.mxu0 0
    %407 = vmatprep.subr.bf16.mxu0 0
    %408 = vmatpush1.bf16.msra.mxu0 0
    %409 = vmatprep.subr.bf16.mxu0 0
    %410 = vmatpush1.bf16.msra.mxu0 0
    %411 = vmatprep.subr.bf16.mxu0 0
    %412 = vmatpush1.bf16.msra.mxu0 0
    %413 = vmatprep.subr.bf16.mxu0 0
    %414 = vmatpush1.bf16.msra.mxu0 0
    %415 = vmatprep.subr.bf16.mxu0 0
    %416 = vmatpush1.bf16.msra.mxu0 0
    %417 = vmatprep.subr.bf16.mxu0 0
    %418 = vmatpush1.bf16.msra.mxu0 0
    %419 = vmatprep.subr.bf16.mxu0 0
    %420 = vmatpush1.bf16.msra.mxu0 0
    %421 = vmatprep.subr.bf16.mxu0 0
    %422 = vmatpush1.bf16.msra.mxu0 0
    %423 = vmatprep.mubr.bf16.mxu0 0
    %424 = vmatmul.mubr.bf16.gmra.mrb[0].mxu0 %v368
    %v425 = vpop.f32.mrb[0].mxu0
    %v426 = vadd.f32 0.0, %v425
    %v427 = vpop.f32.mrb[0].mxu0
    %v428 = vpop.f32.mrb[0].mxu0
    %v429 = vadd.f32 0.0, %v428
    %v430 = vpop.f32.mrb[0].mxu0
    %431 = vmatprep.mubr.bf16.mxu0 0
    %432 = vmatmul.mubr.bf16.gmra.mrb[0].mxu0 %v371
    %v433 = vpop.f32.mrb[0].mxu0
    %v434 = vadd.f32 0.0, %v433
    %v435 = vpop.f32.mrb[0].mxu0
    %v436 = vpop.f32.mrb[0].mxu0
    %v437 = vadd.f32 0.0, %v436
    %v438 = vpop.f32.mrb[0].mxu0
    %439 = vmatprep.mubr.bf16.mxu0 0
    %440 = vmatmul.mubr.bf16.gmra.mrb[0].mxu0 %v374
    %v441 = vpop.f32.mrb[0].mxu0
    %v442 = vadd.f32 0.0, %v441
    %v443 = vpop.f32.mrb[0].mxu0
    %v444 = vpop.f32.mrb[0].mxu0
    %v445 = vadd.f32 0.0, %v444
    %v446 = vpop.f32.mrb[0].mxu0
    %447 = vmatprep.mubr.bf16.mxu0 0
    %448 = vmatmul.mubr.bf16.gmra.mrb[0].mxu0 %v377
    %v449 = vpop.f32.mrb[0].mxu0
    %v450 = vadd.f32 0.0, %v449
    %v451 = vpop.f32.mrb[0].mxu0
    %v452 = vpop.f32.mrb[0].mxu0
    %v453 = vadd.f32 0.0, %v452
    %v454 = vpop.f32.mrb[0].mxu0
    %455 = vmatprep.mubr.bf16.mxu0 0
    %456 = vmatmul.mubr.bf16.gmra.mrb[0].mxu0 %v380
    %v457 = vpop.f32.mrb[0].mxu0
    %v458 = vadd.f32 0.0, %v457
    %v459 = vpop.f32.mrb[0].mxu0
    %v460 = vpop.f32.mrb[0].mxu0
    %v461 = vadd.f32 0.0, %v460
    %v462 = vpop.f32.mrb[0].mxu0
    %463 = vmatprep.mubr.bf16.mxu0 0
    %464 = vmatmul.mubr.bf16.gmra.mrb[0].mxu0 %v383
    %v465 = vpop.f32.mrb[0].mxu0
    %v466 = vadd.f32 0.0, %v465
    %v467 = vpop.f32.mrb[0].mxu0
    %v468 = vpop.f32.mrb[0].mxu0
    %v469 = vadd.f32 0.0, %v468
    %v470 = vpop.f32.mrb[0].mxu0
    %471 = vmatprep.mubr.bf16.mxu0 0
    %472 = vmatmul.mubr.bf16.gmra.mrb[0].mxu0 %v386
    %v473 = vpop.f32.mrb[0].mxu0
    %v474 = vadd.f32 0.0, %v473
    %v475 = vpop.f32.mrb[0].mxu0
    %v476 = vpop.f32.mrb[0].mxu0
    %v477 = vadd.f32 0.0, %v476
    %v478 = vpop.f32.mrb[0].mxu0
    %479 = vmatprep.mubr.bf16.mxu0 0
    %480 = vmatmul.mubr.bf16.gmra.mrb[0].mxu0 %v389
    %v481 = vpop.f32.mrb[0].mxu0
    %v482 = vadd.f32 0.0, %v481
    %v483 = vpop.f32.mrb[0].mxu0
    %v484 = vpop.f32.mrb[0].mxu0
    %v485 = vadd.f32 0.0, %v484
    %v486 = vpop.f32.mrb[0].mxu0
    %487 = vdwg.mxu0
    %vm488 = vcmask 392192
    %489 = vst.msk [vmem:[%s4] sm:$0xff] %vm488, %v426
    %490 = vst.msk [vmem:[%s4 + $0x8] sm:$0xff] %vm488, %v429
    %491 = vst.msk [vmem:[%s4 + $0x10] sm:$0xff] %vm488, %v434
    %492 = vst.msk [vmem:[%s4 + $0x18] sm:$0xff] %vm488, %v437
    %493 = vst.msk [vmem:[%s4 + $0x20] sm:$0xff] %vm488, %v442
    %494 = vst.msk [vmem:[%s4 + $0x28] sm:$0xff] %vm488, %v445
    %495 = vst.msk [vmem:[%s4 + $0x30] sm:$0xff] %vm488, %v450
    %496 = vst.msk [vmem:[%s4 + $0x38] sm:$0xff] %vm488, %v453
    %497 = vst.msk [vmem:[%s4 + $0x40] sm:$0xff] %vm488, %v458
    %498 = vst.msk [vmem:[%s4 + $0x48] sm:$0xff] %vm488, %v461
    %499 = vst.msk [vmem:[%s4 + $0x50] sm:$0xff] %vm488, %v466
    %500 = vst.msk [vmem:[%s4 + $0x58] sm:$0xff] %vm488, %v469
    %501 = vst.msk [vmem:[%s4 + $0x60] sm:$0xff] %vm488, %v474
    %502 = vst.msk [vmem:[%s4 + $0x68] sm:$0xff] %vm488, %v477
    %503 = vst.msk [vmem:[%s4 + $0x70] sm:$0xff] %vm488, %v482
    %504 = vst.msk [vmem:[%s4 + $0x78] sm:$0xff] %vm488, %v485
    // Predicated region
    $region30: #{baca_forward.2} parent=1 // pred_check
      _
    $region31: #{baca_forward.2} parent=1 // pred_check_branch
      %506 = sbr.rel (0) target = $region33
    $region32: #{baca_forward.2} parent=1 // pred_region
      _
    $region33: #{baca_forward.2} parent=1 // pred_fallthru
      _
    // Predicated region
    $region34: #{baca_forward.2} parent=1 // pred_check
      _
    $region35: #{baca_forward.2} parent=1 // pred_check_branch
      %508 = sbr.rel (0) target = $region37
    $region36: #{baca_forward.2} parent=1 // pred_region
      _
    $region37: #{baca_forward.2} parent=1 // pred_fallthru
      _
    %509 = vsyncpa [#allocation3], 1
    %510 = vsyncpa [#allocation5], 1

// kernel: baca_forward.3
$region0: #{baca_forward.3}
  #allocation0 [shape = 'u32[]', space=smem, size = 0x4, offset = 0x4, fixed_abs, tag = 'smem constant byte address 0x4 - core index']
  #allocation1 [shape = 'u32[144,128]{1,0:T(1,128)}', space=vmem, size = 0x12000, scoped, tag = 'internal scratch']
  %s0 = inlined_call_operand.vmem [shape: f32[128,16], index: 0, kind: input, shape index: {}]
  %s1 = inlined_call_operand.vmem [shape: bf16[128,144], index: 1, kind: input, shape index: {}]
  %s2 = inlined_call_operand.vmem [shape: bf16[128,144], index: 2, kind: input, shape index: {}]
  %s3 = inlined_call_operand.vmem [shape: f32[128,64], index: 3, kind: input, shape index: {}]
  %s4 = inlined_call_operand.vmem [shape: f32[16,36], index: 4, kind: input, shape index: {}]
  %s5 = inlined_call_operand.vmem [shape: f32[144,36], index: 5, kind: input, shape index: {}]
  %s6 = inlined_call_operand.vmem [shape: f32[36,144], index: 6, kind: input, shape index: {}]
  %s7 = inlined_call_operand.vmem [shape: f32[36,36], index: 7, kind: input, shape index: {}]
  %s8 = inlined_call_operand.vmem [shape: f32[64,16], index: 8, kind: input, shape index: {}]
  %s9 = inlined_call_operand.vmem [shape: f32[1,16], index: 9, kind: input, shape index: {}]
  %s10 = inlined_call_operand.vmem [shape: f32[144,16], index: 10, kind: input, shape index: {}]
  %s11 = inlined_call_operand.hbm [shape: f32[128,16], index: 11, kind: output, shape index: {}]
  %s12 = sld [smem:[#allocation0]]
  $region54: #{baca_forward.3} parent=0
    _
  %s14 = ssub.s32 1, %s12
  %s15 = scalar_select 0, %s14, %s12
  $region1: #{baca_forward.3} parent=0
    #allocation2 [shape = 'u8[65536]{0}', space=vmem, size = 0x10000, scoped, tag = 'output window, operand 0, single buffered']
    #allocation3 [shape = 's32[1]{0}', space=sflag, size = 0x4, scoped, tag = 'scoped memory for baca_forward.3']
    %16 = vsyncpa [#allocation3], 0
    // Predicated region
    $region2: #{baca_forward.3} parent=1 // pred_check
      _
    $region3: #{baca_forward.3} parent=1 // pred_check_branch
      %18 = sbr.rel (0) target = $region5
    $region4: #{baca_forward.3} parent=1 // pred_region
      _
    $region5: #{baca_forward.3} parent=1 // pred_fallthru
      _
    // Predicated region
    $region6: #{baca_forward.3} parent=1 // pred_check
      _
    $region7: #{baca_forward.3} parent=1 // pred_check_branch
      %20 = sbr.rel (0) target = $region9
    $region8: #{baca_forward.3} parent=1 // pred_region
      _
    $region9: #{baca_forward.3} parent=1 // pred_fallthru
      _
    // Predicated region
    $region10: #{baca_forward.3} parent=1 // pred_check
      _
    $region11: #{baca_forward.3} parent=1 // pred_check_branch
      %22 = sbr.rel (0) target = $region13
    $region12: #{baca_forward.3} parent=1 // pred_region
      _
    $region13: #{baca_forward.3} parent=1 // pred_fallthru
      _
    // Predicated region
    $region14: #{baca_forward.3} parent=1 // pred_check
      _
    $region15: #{baca_forward.3} parent=1 // pred_check_branch
      %24 = sbr.rel (0) target = $region17
    $region16: #{baca_forward.3} parent=1 // pred_region
      _
    $region17: #{baca_forward.3} parent=1 // pred_fallthru
      _
    // Predicated region
    $region18: #{baca_forward.3} parent=1 // pred_check
      _
    $region19: #{baca_forward.3} parent=1 // pred_check_branch
      %26 = sbr.rel (0) target = $region21
    $region20: #{baca_forward.3} parent=1 // pred_region
      _
    $region21: #{baca_forward.3} parent=1 // pred_fallthru
      _
    // Predicated region
    $region22: #{baca_forward.3} parent=1 // pred_check
      _
    $region23: #{baca_forward.3} parent=1 // pred_check_branch
      %28 = sbr.rel (0) target = $region25
    $region24: #{baca_forward.3} parent=1 // pred_region
      _
    $region25: #{baca_forward.3} parent=1 // pred_fallthru
      _
    // Predicated region
    $region26: #{baca_forward.3} parent=1 // pred_check
      _
    $region27: #{baca_forward.3} parent=1 // pred_check_branch
      %30 = sbr.rel (0) target = $region29
    $region28: #{baca_forward.3} parent=1 // pred_region
      _
    $region29: #{baca_forward.3} parent=1 // pred_fallthru
      _
    // Predicated region
    $region30: #{baca_forward.3} parent=1 // pred_check
      _
    $region31: #{baca_forward.3} parent=1 // pred_check_branch
      %32 = sbr.rel (0) target = $region33
    $region32: #{baca_forward.3} parent=1 // pred_region
      _
    $region33: #{baca_forward.3} parent=1 // pred_fallthru
      _
    // Predicated region
    $region34: #{baca_forward.3} parent=1 // pred_check
      _
    $region35: #{baca_forward.3} parent=1 // pred_check_branch
      %34 = sbr.rel (0) target = $region37
    $region36: #{baca_forward.3} parent=1 // pred_region
      _
    $region37: #{baca_forward.3} parent=1 // pred_fallthru
      _
    // Predicated region
    $region38: #{baca_forward.3} parent=1 // pred_check
      _
    $region39: #{baca_forward.3} parent=1 // pred_check_branch
      %36 = sbr.rel (0) target = $region41
    $region40: #{baca_forward.3} parent=1 // pred_region
      _
    $region41: #{baca_forward.3} parent=1 // pred_fallthru
      _
    // Predicated region
    $region42: #{baca_forward.3} parent=1 // pred_check
      _
    $region43: #{baca_forward.3} parent=1 // pred_check_branch
      %38 = sbr.rel (0) target = $region45
    $region44: #{baca_forward.3} parent=1 // pred_region
      _
    $region45: #{baca_forward.3} parent=1 // pred_fallthru
      _
    %v39 = vld [vmem:[%s0] sm:$0xff]
    %v40 = vld [vmem:[%s0 + $0x8] sm:$0xff]
    %v41 = vld [vmem:[%s0 + $0x10] sm:$0xff]
    %v42 = vld [vmem:[%s0 + $0x18] sm:$0xff]
    %v43 = vld [vmem:[%s0 + $0x20] sm:$0xff]
    %v44 = vld [vmem:[%s0 + $0x28] sm:$0xff]
    %v45 = vld [vmem:[%s0 + $0x30] sm:$0xff]
    %v46 = vld [vmem:[%s0 + $0x38] sm:$0xff]
    %v47 = vld [vmem:[%s0 + $0x40] sm:$0xff]
    %v48 = vld [vmem:[%s0 + $0x48] sm:$0xff]
    %v49 = vld [vmem:[%s0 + $0x50] sm:$0xff]
    %v50 = vld [vmem:[%s0 + $0x58] sm:$0xff]
    %v51 = vld [vmem:[%s0 + $0x60] sm:$0xff]
    %v52 = vld [vmem:[%s0 + $0x68] sm:$0xff]
    %v53 = vld [vmem:[%s0 + $0x70] sm:$0xff]
    %v54 = vld [vmem:[%s0 + $0x78] sm:$0xff]
    %v55 = vld [vmem:[%s3] sm:$0xff]
    %v56 = vld [vmem:[%s3 + $0x8] sm:$0xff]
    %v57 = vld [vmem:[%s3 + $0x10] sm:$0xff]
    %v58 = vld [vmem:[%s3 + $0x18] sm:$0xff]
    %v59 = vld [vmem:[%s3 + $0x20] sm:$0xff]
    %v60 = vld [vmem:[%s3 + $0x28] sm:$0xff]
    %v61 = vld [vmem:[%s3 + $0x30] sm:$0xff]
    %v62 = vld [vmem:[%s3 + $0x38] sm:$0xff]
    %v63 = vld [vmem:[%s3 + $0x40] sm:$0xff]
    %v64 = vld [vmem:[%s3 + $0x48] sm:$0xff]
    %v65 = vld [vmem:[%s3 + $0x50] sm:$0xff]
    %v66 = vld [vmem:[%s3 + $0x58] sm:$0xff]
    %v67 = vld [vmem:[%s3 + $0x60] sm:$0xff]
    %v68 = vld [vmem:[%s3 + $0x68] sm:$0xff]
    %v69 = vld [vmem:[%s3 + $0x70] sm:$0xff]
    %v70 = vld [vmem:[%s3 + $0x78] sm:$0xff]
    %v71 = vld [vmem:[%s8] sm:$0xff]
    %v72 = vld [vmem:[%s8 + $0x8] sm:$0xff]
    %v73 = vld [vmem:[%s8 + $0x10] sm:$0xff]
    %v74 = vld [vmem:[%s8 + $0x18] sm:$0xff]
    %v75 = vld [vmem:[%s8 + $0x20] sm:$0xff]
    %v76 = vld [vmem:[%s8 + $0x28] sm:$0xff]
    %v77 = vld [vmem:[%s8 + $0x30] sm:$0xff]
    %v78 = vld [vmem:[%s8 + $0x38] sm:$0xff]
    %v79 = vld [vmem:[%s9] sm:$0x1]
    %v81 = vlaneseq
    %v82 = vshrl.u32 %v81, 7
    %v83 = vsub.s32 0, %v82
    %v84 = vrot.slane %v79, %v83
    %vm86 = vcmask 523264
    %v88 = vsel %vm86, %v55, 0
    %v91 = vsel %vm86, %v56, 0
    %v94 = vsel %vm86, %v57, 0
    %v97 = vsel %vm86, %v58, 0
    %v100 = vsel %vm86, %v59, 0
    %v103 = vsel %vm86, %v60, 0
    %v106 = vsel %vm86, %v61, 0
    %v109 = vsel %vm86, %v62, 0
    %v112 = vsel %vm86, %v63, 0
    %v115 = vsel %vm86, %v64, 0
    %v118 = vsel %vm86, %v65, 0
    %v121 = vsel %vm86, %v66, 0
    %v124 = vsel %vm86, %v67, 0
    %v127 = vsel %vm86, %v68, 0
    %v130 = vsel %vm86, %v69, 0
    %v133 = vsel %vm86, %v70, 0
    %135 = vmatprep.subr.mxu0 0.0
    %136 = vmatpush1.msra.mxu0 %v71
    %137 = vmatprep.subr.mxu0 0.0
    %138 = vmatpush1.msra.mxu0 %v72
    %139 = vmatprep.subr.mxu0 0.0
    %140 = vmatpush1.msra.mxu0 %v73
    %141 = vmatprep.subr.mxu0 0.0
    %142 = vmatpush1.msra.mxu0 %v74
    %143 = vmatprep.subr.mxu0 0.0
    %144 = vmatpush1.msra.mxu0 %v75
    %145 = vmatprep.subr.mxu0 0.0
    %146 = vmatpush1.msra.mxu0 %v76
    %147 = vmatprep.subr.mxu0 0.0
    %148 = vmatpush1.msra.mxu0 %v77
    %149 = vmatprep.subr.mxu0 0.0
    %150 = vmatpush1.msra.mxu0 %v78
    %151 = vmatprep.subr.mxu0 0.0
    %152 = vmatpush1.msra.mxu0 0.0
    %153 = vmatprep.subr.mxu0 0.0
    %154 = vmatpush1.msra.mxu0 0.0
    %155 = vmatprep.subr.mxu0 0.0
    %156 = vmatpush1.msra.mxu0 0.0
    %157 = vmatprep.subr.mxu0 0.0
    %158 = vmatpush1.msra.mxu0 0.0
    %159 = vmatprep.subr.mxu0 0.0
    %160 = vmatpush1.msra.mxu0 0.0
    %161 = vmatprep.subr.mxu0 0.0
    %162 = vmatpush1.msra.mxu0 0.0
    %163 = vmatprep.subr.mxu0 0.0
    %164 = vmatpush1.msra.mxu0 0.0
    %165 = vmatprep.subr.mxu0 0.0
    %166 = vmatpush1.msra.mxu0 0.0
    %167 = vmatprep.subr.mxu0 0.0
    %168 = vmatpush1.msra.mxu0 0.0
    %169 = vmatprep.subr.mxu0 0.0
    %170 = vmatpush1.msra.mxu0 0.0
    %171 = vmatprep.subr.mxu0 0.0
    %172 = vmatpush1.msra.mxu0 0.0
    %173 = vmatprep.subr.mxu0 0.0
    %174 = vmatpush1.msra.mxu0 0.0
    %175 = vmatprep.subr.mxu0 0.0
    %176 = vmatpush1.msra.mxu0 0.0
    %177 = vmatprep.subr.mxu0 0.0
    %178 = vmatpush1.msra.mxu0 0.0
    %179 = vmatprep.subr.mxu0 0.0
    %180 = vmatpush1.msra.mxu0 0.0
    %181 = vmatprep.subr.mxu0 0.0
    %182 = vmatpush1.msra.mxu0 0.0
    %183 = vmatprep.subr.mxu0 0.0
    %184 = vmatpush1.msra.mxu0 0.0
    %185 = vmatprep.subr.mxu0 0.0
    %186 = vmatpush1.msra.mxu0 0.0
    %187 = vmatprep.subr.mxu0 0.0
    %188 = vmatpush1.msra.mxu0 0.0
    %189 = vmatprep.subr.mxu0 0.0
    %190 = vmatpush1.msra.mxu0 0.0
    %191 = vmatprep.subr.mxu0 0.0
    %192 = vmatpush1.msra.mxu0 0.0
    %193 = vmatprep.subr.mxu0 0.0
    %194 = vmatpush1.msra.mxu0 0.0
    %195 = vmatprep.subr.mxu0 0.0
    %196 = vmatpush1.msra.mxu0 0.0
    %197 = vmatprep.subr.mxu0 0.0
    %198 = vmatpush1.msra.mxu0 0.0
    %199 = vmatprep.mubr.f32.mxu0 0.0
    %200 = vmatmul.mubr.f32.gmra.mrb[0].mxu0 %v88
    %v201 = vpop.f32.mrb[0].mxu0
    %v202 = vadd.f32 %v84, %v201
    %v203 = vpop.f32.mrb[0].mxu0
    %204 = vmatprep.mubr.f32.mxu0 0.0
    %205 = vmatmul.mubr.f32.gmra.mrb[0].mxu0 %v91
    %v206 = vpop.f32.mrb[0].mxu0
    %v207 = vadd.f32 %v84, %v206
    %v208 = vpop.f32.mrb[0].mxu0
    %209 = vmatprep.mubr.f32.mxu0 0.0
    %210 = vmatmul.mubr.f32.gmra.mrb[0].mxu0 %v94
    %v211 = vpop.f32.mrb[0].mxu0
    %v212 = vadd.f32 %v84, %v211
    %v213 = vpop.f32.mrb[0].mxu0
    %214 = vmatprep.mubr.f32.mxu0 0.0
    %215 = vmatmul.mubr.f32.gmra.mrb[0].mxu0 %v97
    %v216 = vpop.f32.mrb[0].mxu0
    %v217 = vadd.f32 %v84, %v216
    %v218 = vpop.f32.mrb[0].mxu0
    %219 = vmatprep.mubr.f32.mxu0 0.0
    %220 = vmatmul.mubr.f32.gmra.mrb[0].mxu0 %v100
    %v221 = vpop.f32.mrb[0].mxu0
    %v222 = vadd.f32 %v84, %v221
    %v223 = vpop.f32.mrb[0].mxu0
    %224 = vmatprep.mubr.f32.mxu0 0.0
    %225 = vmatmul.mubr.f32.gmra.mrb[0].mxu0 %v103
    %v226 = vpop.f32.mrb[0].mxu0
    %v227 = vadd.f32 %v84, %v226
    %v228 = vpop.f32.mrb[0].mxu0
    %229 = vmatprep.mubr.f32.mxu0 0.0
    %230 = vmatmul.mubr.f32.gmra.mrb[0].mxu0 %v106
    %v231 = vpop.f32.mrb[0].mxu0
    %v232 = vadd.f32 %v84, %v231
    %v233 = vpop.f32.mrb[0].mxu0
    %234 = vmatprep.mubr.f32.mxu0 0.0
    %235 = vmatmul.mubr.f32.gmra.mrb[0].mxu0 %v109
    %v236 = vpop.f32.mrb[0].mxu0
    %v237 = vadd.f32 %v84, %v236
    %v238 = vpop.f32.mrb[0].mxu0
    %239 = vmatprep.mubr.f32.mxu0 0.0
    %240 = vmatmul.mubr.f32.gmra.mrb[0].mxu0 %v112
    %v241 = vpop.f32.mrb[0].mxu0
    %v242 = vadd.f32 %v84, %v241
    %v243 = vpop.f32.mrb[0].mxu0
    %244 = vmatprep.mubr.f32.mxu0 0.0
    %245 = vmatmul.mubr.f32.gmra.mrb[0].mxu0 %v115
    %v246 = vpop.f32.mrb[0].mxu0
    %v247 = vadd.f32 %v84, %v246
    %v248 = vpop.f32.mrb[0].mxu0
    %249 = vmatprep.mubr.f32.mxu0 0.0
    %250 = vmatmul.mubr.f32.gmra.mrb[0].mxu0 %v118
    %v251 = vpop.f32.mrb[0].mxu0
    %v252 = vadd.f32 %v84, %v251
    %v253 = vpop.f32.mrb[0].mxu0
    %254 = vmatprep.mubr.f32.mxu0 0.0
    %255 = vmatmul.mubr.f32.gmra.mrb[0].mxu0 %v121
    %v256 = vpop.f32.mrb[0].mxu0
    %v257 = vadd.f32 %v84, %v256
    %v258 = vpop.f32.mrb[0].mxu0
    %259 = vmatprep.mubr.f32.mxu0 0.0
    %260 = vmatmul.mubr.f32.gmra.mrb[0].mxu0 %v124
    %v261 = vpop.f32.mrb[0].mxu0
    %v262 = vadd.f32 %v84, %v261
    %v263 = vpop.f32.mrb[0].mxu0
    %264 = vmatprep.mubr.f32.mxu0 0.0
    %265 = vmatmul.mubr.f32.gmra.mrb[0].mxu0 %v127
    %v266 = vpop.f32.mrb[0].mxu0
    %v267 = vadd.f32 %v84, %v266
    %v268 = vpop.f32.mrb[0].mxu0
    %269 = vmatprep.mubr.f32.mxu0 0.0
    %270 = vmatmul.mubr.f32.gmra.mrb[0].mxu0 %v130
    %v271 = vpop.f32.mrb[0].mxu0
    %v272 = vadd.f32 %v84, %v271
    %v273 = vpop.f32.mrb[0].mxu0
    %274 = vmatprep.mubr.f32.mxu0 0.0
    %275 = vmatmul.mubr.f32.gmra.mrb[0].mxu0 %v133
    %v276 = vpop.f32.mrb[0].mxu0
    %v277 = vadd.f32 %v84, %v276
    %v278 = vpop.f32.mrb[0].mxu0
    %279 = vdwg.mxu0
    %v280 = vld [vmem:[%s4] sm:$0xff]
    %v281 = vld [vmem:[%s4 + $0x8] sm:$0xff]
    %vm282 = vcmask 130048
    %v284 = vsel %vm282, %v39, 0
    %v287 = vsel %vm282, %v40, 0
    %v290 = vsel %vm282, %v41, 0
    %v293 = vsel %vm282, %v42, 0
    %v296 = vsel %vm282, %v43, 0
    %v299 = vsel %vm282, %v44, 0
    %v302 = vsel %vm282, %v45, 0
    %v305 = vsel %vm282, %v46, 0
    %v308 = vsel %vm282, %v47, 0
    %v311 = vsel %vm282, %v48, 0
    %v314 = vsel %vm282, %v49, 0
    %v317 = vsel %vm282, %v50, 0
    %v320 = vsel %vm282, %v51, 0
    %v323 = vsel %vm282, %v52, 0
    %v326 = vsel %vm282, %v53, 0
    %v329 = vsel %vm282, %v54, 0
    %331 = vmatprep.subr.mxu0 0.0
    %332 = vmatpush1.msra.mxu0 %v280
    %333 = vmatprep.subr.mxu0 0.0
    %334 = vmatpush1.msra.mxu0 %v281
    %335 = vmatprep.subr.mxu0 0.0
    %336 = vmatpush1.msra.mxu0 0.0
    %337 = vmatprep.subr.mxu0 0.0
    %338 = vmatpush1.msra.mxu0 0.0
    %339 = vmatprep.subr.mxu0 0.0
    %340 = vmatpush1.msra.mxu0 0.0
    %341 = vmatprep.subr.mxu0 0.0
    %342 = vmatpush1.msra.mxu0 0.0
    %343 = vmatprep.subr.mxu0 0.0
    %344 = vmatpush1.msra.mxu0 0.0
    %345 = vmatprep.subr.mxu0 0.0
    %346 = vmatpush1.msra.mxu0 0.0
    %347 = vmatprep.subr.mxu0 0.0
    %348 = vmatpush1.msra.mxu0 0.0
    %349 = vmatprep.subr.mxu0 0.0
    %350 = vmatpush1.msra.mxu0 0.0
    %351 = vmatprep.subr.mxu0 0.0
    %352 = vmatpush1.msra.mxu0 0.0
    %353 = vmatprep.subr.mxu0 0.0
    %354 = vmatpush1.msra.mxu0 0.0
    %355 = vmatprep.subr.mxu0 0.0
    %356 = vmatpush1.msra.mxu0 0.0
    %357 = vmatprep.subr.mxu0 0.0
    %358 = vmatpush1.msra.mxu0 0.0
    %359 = vmatprep.subr.mxu0 0.0
    %360 = vmatpush1.msra.mxu0 0.0
    %361 = vmatprep.subr.mxu0 0.0
    %362 = vmatpush1.msra.mxu0 0.0
    %363 = vmatprep.subr.mxu0 0.0
    %364 = vmatpush1.msra.mxu0 0.0
    %365 = vmatprep.subr.mxu0 0.0
    %366 = vmatpush1.msra.mxu0 0.0
    %367 = vmatprep.subr.mxu0 0.0
    %368 = vmatpush1.msra.mxu0 0.0
    %369 = vmatprep.subr.mxu0 0.0
    %370 = vmatpush1.msra.mxu0 0.0
    %371 = vmatprep.subr.mxu0 0.0
    %372 = vmatpush1.msra.mxu0 0.0
    %373 = vmatprep.subr.mxu0 0.0
    %374 = vmatpush1.msra.mxu0 0.0
    %375 = vmatprep.subr.mxu0 0.0
    %376 = vmatpush1.msra.mxu0 0.0
    %377 = vmatprep.subr.mxu0 0.0
    %378 = vmatpush1.msra.mxu0 0.0
    %379 = vmatprep.subr.mxu0 0.0
    %380 = vmatpush1.msra.mxu0 0.0
    %381 = vmatprep.subr.mxu0 0.0
    %382 = vmatpush1.msra.mxu0 0.0
    %383 = vmatprep.subr.mxu0 0.0
    %384 = vmatpush1.msra.mxu0 0.0
    %385 = vmatprep.subr.mxu0 0.0
    %386 = vmatpush1.msra.mxu0 0.0
    %387 = vmatprep.subr.mxu0 0.0
    %388 = vmatpush1.msra.mxu0 0.0
    %389 = vmatprep.subr.mxu0 0.0
    %390 = vmatpush1.msra.mxu0 0.0
    %391 = vmatprep.subr.mxu0 0.0
    %392 = vmatpush1.msra.mxu0 0.0
    %393 = vmatprep.subr.mxu0 0.0
    %394 = vmatpush1.msra.mxu0 0.0
    %395 = vmatprep.mubr.f32.mxu0 0.0
    %396 = vmatmul.mubr.f32.gmra.mrb[0].mxu0 %v284
    %v397 = vpop.f32.mrb[0].mxu0
    %v398 = vadd.f32 0.0, %v397
    %v399 = vpop.f32.mrb[0].mxu0
    %400 = vmatprep.mubr.f32.mxu0 0.0
    %401 = vmatmul.mubr.f32.gmra.mrb[0].mxu0 %v287
    %v402 = vpop.f32.mrb[0].mxu0
    %v403 = vadd.f32 0.0, %v402
    %v404 = vpop.f32.mrb[0].mxu0
    %405 = vmatprep.mubr.f32.mxu0 0.0
    %406 = vmatmul.mubr.f32.gmra.mrb[0].mxu0 %v290
    %v407 = vpop.f32.mrb[0].mxu0
    %v408 = vadd.f32 0.0, %v407
    %v409 = vpop.f32.mrb[0].mxu0
    %410 = vmatprep.mubr.f32.mxu0 0.0
    %411 = vmatmul.mubr.f32.gmra.mrb[0].mxu0 %v293
    %v412 = vpop.f32.mrb[0].mxu0
    %v413 = vadd.f32 0.0, %v412
    %v414 = vpop.f32.mrb[0].mxu0
    %415 = vmatprep.mubr.f32.mxu0 0.0
    %416 = vmatmul.mubr.f32.gmra.mrb[0].mxu0 %v296
    %v417 = vpop.f32.mrb[0].mxu0
    %v418 = vadd.f32 0.0, %v417
    %v419 = vpop.f32.mrb[0].mxu0
    %420 = vmatprep.mubr.f32.mxu0 0.0
    %421 = vmatmul.mubr.f32.gmra.mrb[0].mxu0 %v299
    %v422 = vpop.f32.mrb[0].mxu0
    %v423 = vadd.f32 0.0, %v422
    %v424 = vpop.f32.mrb[0].mxu0
    %425 = vmatprep.mubr.f32.mxu0 0.0
    %426 = vmatmul.mubr.f32.gmra.mrb[0].mxu0 %v302
    %v427 = vpop.f32.mrb[0].mxu0
    %v428 = vadd.f32 0.0, %v427
    %v429 = vpop.f32.mrb[0].mxu0
    %430 = vmatprep.mubr.f32.mxu0 0.0
    %431 = vmatmul.mubr.f32.gmra.mrb[0].mxu0 %v305
    %v432 = vpop.f32.mrb[0].mxu0
    %v433 = vadd.f32 0.0, %v432
    %v434 = vpop.f32.mrb[0].mxu0
    %435 = vmatprep.mubr.f32.mxu0 0.0
    %436 = vmatmul.mubr.f32.gmra.mrb[0].mxu0 %v308
    %v437 = vpop.f32.mrb[0].mxu0
    %v438 = vadd.f32 0.0, %v437
    %v439 = vpop.f32.mrb[0].mxu0
    %440 = vmatprep.mubr.f32.mxu0 0.0
    %441 = vmatmul.mubr.f32.gmra.mrb[0].mxu0 %v311
    %v442 = vpop.f32.mrb[0].mxu0
    %v443 = vadd.f32 0.0, %v442
    %v444 = vpop.f32.mrb[0].mxu0
    %445 = vmatprep.mubr.f32.mxu0 0.0
    %446 = vmatmul.mubr.f32.gmra.mrb[0].mxu0 %v314
    %v447 = vpop.f32.mrb[0].mxu0
    %v448 = vadd.f32 0.0, %v447
    %v449 = vpop.f32.mrb[0].mxu0
    %450 = vmatprep.mubr.f32.mxu0 0.0
    %451 = vmatmul.mubr.f32.gmra.mrb[0].mxu0 %v317
    %v452 = vpop.f32.mrb[0].mxu0
    %v453 = vadd.f32 0.0, %v452
    %v454 = vpop.f32.mrb[0].mxu0
    %455 = vmatprep.mubr.f32.mxu0 0.0
    %456 = vmatmul.mubr.f32.gmra.mrb[0].mxu0 %v320
    %v457 = vpop.f32.mrb[0].mxu0
    %v458 = vadd.f32 0.0, %v457
    %v459 = vpop.f32.mrb[0].mxu0
    %460 = vmatprep.mubr.f32.mxu0 0.0
    %461 = vmatmul.mubr.f32.gmra.mrb[0].mxu0 %v323
    %v462 = vpop.f32.mrb[0].mxu0
    %v463 = vadd.f32 0.0, %v462
    %v464 = vpop.f32.mrb[0].mxu0
    %465 = vmatprep.mubr.f32.mxu0 0.0
    %466 = vmatmul.mubr.f32.gmra.mrb[0].mxu0 %v326
    %v467 = vpop.f32.mrb[0].mxu0
    %v468 = vadd.f32 0.0, %v467
    %v469 = vpop.f32.mrb[0].mxu0
    %470 = vmatprep.mubr.f32.mxu0 0.0
    %471 = vmatmul.mubr.f32.gmra.mrb[0].mxu0 %v329
    %v472 = vpop.f32.mrb[0].mxu0
    %v473 = vadd.f32 0.0, %v472
    %v474 = vpop.f32.mrb[0].mxu0
    %475 = vdwg.mxu0
    %476 = vrot.lane.b32.xlu0 %v39, 16
    %v477 = vpop.permute.xlu0 %476
    %478 = vrot.lane.b32.xlu0 %v40, 16
    %v479 = vpop.permute.xlu0 %478
    %480 = vrot.lane.b32.xlu0 %v41, 16
    %v481 = vpop.permute.xlu0 %480
    %482 = vrot.lane.b32.xlu0 %v42, 16
    %v483 = vpop.permute.xlu0 %482
    %484 = vrot.lane.b32.xlu0 %v43, 16
    %v485 = vpop.permute.xlu0 %484
    %486 = vrot.lane.b32.xlu0 %v44, 16
    %v487 = vpop.permute.xlu0 %486
    %488 = vrot.lane.b32.xlu0 %v45, 16
    %v489 = vpop.permute.xlu0 %488
    %490 = vrot.lane.b32.xlu0 %v46, 16
    %v491 = vpop.permute.xlu0 %490
    %492 = vrot.lane.b32.xlu0 %v47, 16
    %v493 = vpop.permute.xlu0 %492
    %494 = vrot.lane.b32.xlu0 %v48, 16
    %v495 = vpop.permute.xlu0 %494
    %496 = vrot.lane.b32.xlu0 %v49, 16
    %v497 = vpop.permute.xlu0 %496
    %498 = vrot.lane.b32.xlu0 %v50, 16
    %v499 = vpop.permute.xlu0 %498
    %500 = vrot.lane.b32.xlu0 %v51, 16
    %v501 = vpop.permute.xlu0 %500
    %502 = vrot.lane.b32.xlu0 %v52, 16
    %v503 = vpop.permute.xlu0 %502
    %504 = vrot.lane.b32.xlu0 %v53, 16
    %v505 = vpop.permute.xlu0 %504
    %506 = vrot.lane.b32.xlu0 %v54, 16
    %v507 = vpop.permute.xlu0 %506
    %524 = vrot.lane.b32.xlu0 %v39, 32
    %v525 = vpop.permute.xlu0 %524
    %526 = vrot.lane.b32.xlu0 %v40, 32
    %v527 = vpop.permute.xlu0 %526
    %528 = vrot.lane.b32.xlu0 %v41, 32
    %v529 = vpop.permute.xlu0 %528
    %530 = vrot.lane.b32.xlu0 %v42, 32
    %v531 = vpop.permute.xlu0 %530
    %532 = vrot.lane.b32.xlu0 %v43, 32
    %v533 = vpop.permute.xlu0 %532
    %534 = vrot.lane.b32.xlu0 %v44, 32
    %v535 = vpop.permute.xlu0 %534
    %536 = vrot.lane.b32.xlu0 %v45, 32
    %v537 = vpop.permute.xlu0 %536
    %538 = vrot.lane.b32.xlu0 %v46, 32
    %v539 = vpop.permute.xlu0 %538
    %540 = vrot.lane.b32.xlu0 %v47, 32
    %v541 = vpop.permute.xlu0 %540
    %542 = vrot.lane.b32.xlu0 %v48, 32
    %v543 = vpop.permute.xlu0 %542
    %544 = vrot.lane.b32.xlu0 %v49, 32
    %v545 = vpop.permute.xlu0 %544
    %546 = vrot.lane.b32.xlu0 %v50, 32
    %v547 = vpop.permute.xlu0 %546
    %548 = vrot.lane.b32.xlu0 %v51, 32
    %v549 = vpop.permute.xlu0 %548
    %550 = vrot.lane.b32.xlu0 %v52, 32
    %v551 = vpop.permute.xlu0 %550
    %552 = vrot.lane.b32.xlu0 %v53, 32
    %v553 = vpop.permute.xlu0 %552
    %554 = vrot.lane.b32.xlu0 %v54, 32
    %v555 = vpop.permute.xlu0 %554
    %572 = vrot.lane.b32.xlu0 %v39, 48
    %v573 = vpop.permute.xlu0 %572
    %574 = vrot.lane.b32.xlu0 %v40, 48
    %v575 = vpop.permute.xlu0 %574
    %576 = vrot.lane.b32.xlu0 %v41, 48
    %v577 = vpop.permute.xlu0 %576
    %578 = vrot.lane.b32.xlu0 %v42, 48
    %v579 = vpop.permute.xlu0 %578
    %580 = vrot.lane.b32.xlu0 %v43, 48
    %v581 = vpop.permute.xlu0 %580
    %582 = vrot.lane.b32.xlu0 %v44, 48
    %v583 = vpop.permute.xlu0 %582
    %584 = vrot.lane.b32.xlu0 %v45, 48
    %v585 = vpop.permute.xlu0 %584
    %586 = vrot.lane.b32.xlu0 %v46, 48
    %v587 = vpop.permute.xlu0 %586
    %588 = vrot.lane.b32.xlu0 %v47, 48
    %v589 = vpop.permute.xlu0 %588
    %590 = vrot.lane.b32.xlu0 %v48, 48
    %v591 = vpop.permute.xlu0 %590
    %592 = vrot.lane.b32.xlu0 %v49, 48
    %v593 = vpop.permute.xlu0 %592
    %594 = vrot.lane.b32.xlu0 %v50, 48
    %v595 = vpop.permute.xlu0 %594
    %596 = vrot.lane.b32.xlu0 %v51, 48
    %v597 = vpop.permute.xlu0 %596
    %598 = vrot.lane.b32.xlu0 %v52, 48
    %v599 = vpop.permute.xlu0 %598
    %600 = vrot.lane.b32.xlu0 %v53, 48
    %v601 = vpop.permute.xlu0 %600
    %602 = vrot.lane.b32.xlu0 %v54, 48
    %v603 = vpop.permute.xlu0 %602
    %620 = vrot.lane.b32.xlu0 %v39, 64
    %v621 = vpop.permute.xlu0 %620
    %622 = vrot.lane.b32.xlu0 %v40, 64
    %v623 = vpop.permute.xlu0 %622
    %624 = vrot.lane.b32.xlu0 %v41, 64
    %v625 = vpop.permute.xlu0 %624
    %626 = vrot.lane.b32.xlu0 %v42, 64
    %v627 = vpop.permute.xlu0 %626
    %628 = vrot.lane.b32.xlu0 %v43, 64
    %v629 = vpop.permute.xlu0 %628
    %630 = vrot.lane.b32.xlu0 %v44, 64
    %v631 = vpop.permute.xlu0 %630
    %632 = vrot.lane.b32.xlu0 %v45, 64
    %v633 = vpop.permute.xlu0 %632
    %634 = vrot.lane.b32.xlu0 %v46, 64
    %v635 = vpop.permute.xlu0 %634
    %636 = vrot.lane.b32.xlu0 %v47, 64
    %v637 = vpop.permute.xlu0 %636
    %638 = vrot.lane.b32.xlu0 %v48, 64
    %v639 = vpop.permute.xlu0 %638
    %640 = vrot.lane.b32.xlu0 %v49, 64
    %v641 = vpop.permute.xlu0 %640
    %642 = vrot.lane.b32.xlu0 %v50, 64
    %v643 = vpop.permute.xlu0 %642
    %644 = vrot.lane.b32.xlu0 %v51, 64
    %v645 = vpop.permute.xlu0 %644
    %646 = vrot.lane.b32.xlu0 %v52, 64
    %v647 = vpop.permute.xlu0 %646
    %648 = vrot.lane.b32.xlu0 %v53, 64
    %v649 = vpop.permute.xlu0 %648
    %650 = vrot.lane.b32.xlu0 %v54, 64
    %v651 = vpop.permute.xlu0 %650
    %668 = vrot.lane.b32.xlu0 %v39, 80
    %v669 = vpop.permute.xlu0 %668
    %670 = vrot.lane.b32.xlu0 %v40, 80
    %v671 = vpop.permute.xlu0 %670
    %672 = vrot.lane.b32.xlu0 %v41, 80
    %v673 = vpop.permute.xlu0 %672
    %674 = vrot.lane.b32.xlu0 %v42, 80
    %v675 = vpop.permute.xlu0 %674
    %676 = vrot.lane.b32.xlu0 %v43, 80
    %v677 = vpop.permute.xlu0 %676
    %678 = vrot.lane.b32.xlu0 %v44, 80
    %v679 = vpop.permute.xlu0 %678
    %680 = vrot.lane.b32.xlu0 %v45, 80
    %v681 = vpop.permute.xlu0 %680
    %682 = vrot.lane.b32.xlu0 %v46, 80
    %v683 = vpop.permute.xlu0 %682
    %684 = vrot.lane.b32.xlu0 %v47, 80
    %v685 = vpop.permute.xlu0 %684
    %686 = vrot.lane.b32.xlu0 %v48, 80
    %v687 = vpop.permute.xlu0 %686
    %688 = vrot.lane.b32.xlu0 %v49, 80
    %v689 = vpop.permute.xlu0 %688
    %690 = vrot.lane.b32.xlu0 %v50, 80
    %v691 = vpop.permute.xlu0 %690
    %692 = vrot.lane.b32.xlu0 %v51, 80
    %v693 = vpop.permute.xlu0 %692
    %694 = vrot.lane.b32.xlu0 %v52, 80
    %v695 = vpop.permute.xlu0 %694
    %696 = vrot.lane.b32.xlu0 %v53, 80
    %v697 = vpop.permute.xlu0 %696
    %698 = vrot.lane.b32.xlu0 %v54, 80
    %v699 = vpop.permute.xlu0 %698
    %716 = vrot.lane.b32.xlu0 %v39, 96
    %v717 = vpop.permute.xlu0 %716
    %718 = vrot.lane.b32.xlu0 %v40, 96
    %v719 = vpop.permute.xlu0 %718
    %720 = vrot.lane.b32.xlu0 %v41, 96
    %v721 = vpop.permute.xlu0 %720
    %722 = vrot.lane.b32.xlu0 %v42, 96
    %v723 = vpop.permute.xlu0 %722
    %724 = vrot.lane.b32.xlu0 %v43, 96
    %v725 = vpop.permute.xlu0 %724
    %726 = vrot.lane.b32.xlu0 %v44, 96
    %v727 = vpop.permute.xlu0 %726
    %728 = vrot.lane.b32.xlu0 %v45, 96
    %v729 = vpop.permute.xlu0 %728
    %730 = vrot.lane.b32.xlu0 %v46, 96
    %v731 = vpop.permute.xlu0 %730
    %732 = vrot.lane.b32.xlu0 %v47, 96
    %v733 = vpop.permute.xlu0 %732
    %734 = vrot.lane.b32.xlu0 %v48, 96
    %v735 = vpop.permute.xlu0 %734
    %736 = vrot.lane.b32.xlu0 %v49, 96
    %v737 = vpop.permute.xlu0 %736
    %738 = vrot.lane.b32.xlu0 %v50, 96
    %v739 = vpop.permute.xlu0 %738
    %740 = vrot.lane.b32.xlu0 %v51, 96
    %v741 = vpop.permute.xlu0 %740
    %742 = vrot.lane.b32.xlu0 %v52, 96
    %v743 = vpop.permute.xlu0 %742
    %744 = vrot.lane.b32.xlu0 %v53, 96
    %v745 = vpop.permute.xlu0 %744
    %746 = vrot.lane.b32.xlu0 %v54, 96
    %v747 = vpop.permute.xlu0 %746
    %764 = vrot.lane.b32.xlu0 %v39, 112
    %v765 = vpop.permute.xlu0 %764
    %766 = vrot.lane.b32.xlu0 %v40, 112
    %v767 = vpop.permute.xlu0 %766
    %768 = vrot.lane.b32.xlu0 %v41, 112
    %v769 = vpop.permute.xlu0 %768
    %770 = vrot.lane.b32.xlu0 %v42, 112
    %v771 = vpop.permute.xlu0 %770
    %772 = vrot.lane.b32.xlu0 %v43, 112
    %v773 = vpop.permute.xlu0 %772
    %774 = vrot.lane.b32.xlu0 %v44, 112
    %v775 = vpop.permute.xlu0 %774
    %776 = vrot.lane.b32.xlu0 %v45, 112
    %v777 = vpop.permute.xlu0 %776
    %778 = vrot.lane.b32.xlu0 %v46, 112
    %v779 = vpop.permute.xlu0 %778
    %780 = vrot.lane.b32.xlu0 %v47, 112
    %v781 = vpop.permute.xlu0 %780
    %782 = vrot.lane.b32.xlu0 %v48, 112
    %v783 = vpop.permute.xlu0 %782
    %784 = vrot.lane.b32.xlu0 %v49, 112
    %v785 = vpop.permute.xlu0 %784
    %786 = vrot.lane.b32.xlu0 %v50, 112
    %v787 = vpop.permute.xlu0 %786
    %788 = vrot.lane.b32.xlu0 %v51, 112
    %v789 = vpop.permute.xlu0 %788
    %790 = vrot.lane.b32.xlu0 %v52, 112
    %v791 = vpop.permute.xlu0 %790
    %792 = vrot.lane.b32.xlu0 %v53, 112
    %v793 = vpop.permute.xlu0 %792
    %794 = vrot.lane.b32.xlu0 %v54, 112
    %v795 = vpop.permute.xlu0 %794
    %v812 = vsel %vm282, %v39, %v477
    %v813 = vsel %vm282, %v40, %v479
    %v814 = vsel %vm282, %v41, %v481
    %v815 = vsel %vm282, %v42, %v483
    %v816 = vsel %vm282, %v43, %v485
    %v817 = vsel %vm282, %v44, %v487
    %v818 = vsel %vm282, %v45, %v489
    %v819 = vsel %vm282, %v46, %v491
    %v820 = vsel %vm282, %v47, %v493
    %v821 = vsel %vm282, %v48, %v495
    %v822 = vsel %vm282, %v49, %v497
    %v823 = vsel %vm282, %v50, %v499
    %v824 = vsel %vm282, %v51, %v501
    %v825 = vsel %vm282, %v52, %v503
    %v826 = vsel %vm282, %v53, %v505
    %v827 = vsel %vm282, %v54, %v507
    %vm828 = vcmask 261120
    %v829 = vsel %vm828, %v812, %v525
    %v830 = vsel %vm828, %v813, %v527
    %v831 = vsel %vm828, %v814, %v529
    %v832 = vsel %vm828, %v815, %v531
    %v833 = vsel %vm828, %v816, %v533
    %v834 = vsel %vm828, %v817, %v535
    %v835 = vsel %vm828, %v818, %v537
    %v836 = vsel %vm828, %v819, %v539
    %v837 = vsel %vm828, %v820, %v541
    %v838 = vsel %vm828, %v821, %v543
    %v839 = vsel %vm828, %v822, %v545
    %v840 = vsel %vm828, %v823, %v547
    %v841 = vsel %vm828, %v824, %v549
    %v842 = vsel %vm828, %v825, %v551
    %v843 = vsel %vm828, %v826, %v553
    %v844 = vsel %vm828, %v827, %v555
    %vm845 = vcmask 392192
    %v846 = vsel %vm845, %v829, %v573
    %v847 = vsel %vm845, %v830, %v575
    %v848 = vsel %vm845, %v831, %v577
    %v849 = vsel %vm845, %v832, %v579
    %v850 = vsel %vm845, %v833, %v581
    %v851 = vsel %vm845, %v834, %v583
    %v852 = vsel %vm845, %v835, %v585
    %v853 = vsel %vm845, %v836, %v587
    %v854 = vsel %vm845, %v837, %v589
    %v855 = vsel %vm845, %v838, %v591
    %v856 = vsel %vm845, %v839, %v593
    %v857 = vsel %vm845, %v840, %v595
    %v858 = vsel %vm845, %v841, %v597
    %v859 = vsel %vm845, %v842, %v599
    %v860 = vsel %vm845, %v843, %v601
    %v861 = vsel %vm845, %v844, %v603
    %v862 = vsel %vm86, %v846, %v621
    %v863 = vsel %vm86, %v847, %v623
    %v864 = vsel %vm86, %v848, %v625
    %v865 = vsel %vm86, %v849, %v627
    %v866 = vsel %vm86, %v850, %v629
    %v867 = vsel %vm86, %v851, %v631
    %v868 = vsel %vm86, %v852, %v633
    %v869 = vsel %vm86, %v853, %v635
    %v870 = vsel %vm86, %v854, %v637
    %v871 = vsel %vm86, %v855, %v639
    %v872 = vsel %vm86, %v856, %v641
    %v873 = vsel %vm86, %v857, %v643
    %v874 = vsel %vm86, %v858, %v645
    %v875 = vsel %vm86, %v859, %v647
    %v876 = vsel %vm86, %v860, %v649
    %v877 = vsel %vm86, %v861, %v651
    %vm878 = vcmask 654336
    %v879 = vsel %vm878, %v862, %v669
    %v880 = vsel %vm878, %v863, %v671
    %v881 = vsel %vm878, %v864, %v673
    %v882 = vsel %vm878, %v865, %v675
    %v883 = vsel %vm878, %v866, %v677
    %v884 = vsel %vm878, %v867, %v679
    %v885 = vsel %vm878, %v868, %v681
    %v886 = vsel %vm878, %v869, %v683
    %v887 = vsel %vm878, %v870, %v685
    %v888 = vsel %vm878, %v871, %v687
    %v889 = vsel %vm878, %v872, %v689
    %v890 = vsel %vm878, %v873, %v691
    %v891 = vsel %vm878, %v874, %v693
    %v892 = vsel %vm878, %v875, %v695
    %v893 = vsel %vm878, %v876, %v697
    %v894 = vsel %vm878, %v877, %v699
    %vm895 = vcmask 785408
    %v896 = vsel %vm895, %v879, %v717
    %v897 = vsel %vm895, %v880, %v719
    %v898 = vsel %vm895, %v881, %v721
    %v899 = vsel %vm895, %v882, %v723
    %v900 = vsel %vm895, %v883, %v725
    %v901 = vsel %vm895, %v884, %v727
    %v902 = vsel %vm895, %v885, %v729
    %v903 = vsel %vm895, %v886, %v731
    %v904 = vsel %vm895, %v887, %v733
    %v905 = vsel %vm895, %v888, %v735
    %v906 = vsel %vm895, %v889, %v737
    %v907 = vsel %vm895, %v890, %v739
    %v908 = vsel %vm895, %v891, %v741
    %v909 = vsel %vm895, %v892, %v743
    %v910 = vsel %vm895, %v893, %v745
    %v911 = vsel %vm895, %v894, %v747
    %vm912 = vcmask 916480
    %v913 = vsel %vm912, %v896, %v765
    %v914 = vsel %vm912, %v897, %v767
    %v915 = vsel %vm912, %v898, %v769
    %v916 = vsel %vm912, %v899, %v771
    %v917 = vsel %vm912, %v900, %v773
    %v918 = vsel %vm912, %v901, %v775
    %v919 = vsel %vm912, %v902, %v777
    %v920 = vsel %vm912, %v903, %v779
    %v921 = vsel %vm912, %v904, %v781
    %v922 = vsel %vm912, %v905, %v783
    %v923 = vsel %vm912, %v906, %v785
    %v924 = vsel %vm912, %v907, %v787
    %v925 = vsel %vm912, %v908, %v789
    %v926 = vsel %vm912, %v909, %v791
    %v927 = vsel %vm912, %v910, %v793
    %v928 = vsel %vm912, %v911, %v795
    %v929 = vld [vmem:[%s5] sm:$0xff]
    %v930 = vld [vmem:[%s5 + $0x8] sm:$0xff]
    %v931 = vld [vmem:[%s5 + $0x10] sm:$0xff]
    %v932 = vld [vmem:[%s5 + $0x18] sm:$0xff]
    %v933 = vld [vmem:[%s5 + $0x20] sm:$0xff]
    %v934 = vld [vmem:[%s5 + $0x28] sm:$0xff]
    %v935 = vld [vmem:[%s5 + $0x30] sm:$0xff]
    %v936 = vld [vmem:[%s5 + $0x38] sm:$0xff]
    %v937 = vld [vmem:[%s5 + $0x40] sm:$0xff]
    %v938 = vld [vmem:[%s5 + $0x48] sm:$0xff]
    %v939 = vld [vmem:[%s5 + $0x50] sm:$0xff]
    %v940 = vld [vmem:[%s5 + $0x58] sm:$0xff]
    %v941 = vld [vmem:[%s5 + $0x60] sm:$0xff]
    %v942 = vld [vmem:[%s5 + $0x68] sm:$0xff]
    %v943 = vld [vmem:[%s5 + $0x70] sm:$0xff]
    %v944 = vld [vmem:[%s5 + $0x78] sm:$0xff]
    %v945 = vld [vmem:[%s5 + $0x80] sm:$0xff]
    %v946 = vld [vmem:[%s5 + $0x88] sm:$0xff]
    %v947 = vld [vmem:[%s6] sm:$0xff]
    %v948 = vld [vmem:[%s6 + $0x8] sm:$0xff]
    %v949 = vld [vmem:[%s6 + $0x10] sm:$0xff]
    %v950 = vld [vmem:[%s6 + $0x18] sm:$0xff]
    %v951 = vld [vmem:[%s6 + $0x20] sm:$0xff]
    %v952 = vld [vmem:[%s6 + $0x28] sm:$0xff]
    %v953 = vld [vmem:[%s6 + $0x30] sm:$0xff]
    %v954 = vld [vmem:[%s6 + $0x38] sm:$0xff]
    %v955 = vld [vmem:[%s6 + $0x40] sm:$0xf]
    %v956 = vld [vmem:[%s6 + $0x48] sm:$0xf]
    %v957 = vld [vmem:[%s7] sm:$0xff]
    %v958 = vld [vmem:[%s7 + $0x8] sm:$0xff]
    %v959 = vld [vmem:[%s7 + $0x10] sm:$0xff]
    %v960 = vld [vmem:[%s7 + $0x18] sm:$0xff]
    %v961 = vld [vmem:[%s7 + $0x20] sm:$0xf]
    %v962 = vld [vmem:[%s10] sm:$0xff]
    %v963 = vld [vmem:[%s10 + $0x8] sm:$0xff]
    %v964 = vld [vmem:[%s10 + $0x10] sm:$0xff]
    %v965 = vld [vmem:[%s10 + $0x18] sm:$0xff]
    %v966 = vld [vmem:[%s10 + $0x20] sm:$0xff]
    %v967 = vld [vmem:[%s10 + $0x28] sm:$0xff]
    %v968 = vld [vmem:[%s10 + $0x30] sm:$0xff]
    %v969 = vld [vmem:[%s10 + $0x38] sm:$0xff]
    %v970 = vld [vmem:[%s10 + $0x40] sm:$0xff]
    %v971 = vld [vmem:[%s10 + $0x48] sm:$0xff]
    %v972 = vld [vmem:[%s10 + $0x50] sm:$0xff]
    %v973 = vld [vmem:[%s10 + $0x58] sm:$0xff]
    %v974 = vld [vmem:[%s10 + $0x60] sm:$0xff]
    %v975 = vld [vmem:[%s10 + $0x68] sm:$0xff]
    %v976 = vld [vmem:[%s10 + $0x70] sm:$0xff]
    %v977 = vld [vmem:[%s10 + $0x78] sm:$0xff]
    %v978 = vld [vmem:[%s10 + $0x80] sm:$0xff]
    %v979 = vld [vmem:[%s10 + $0x88] sm:$0xff]
    %v980 = vld [vmem:[%s1] sm:$0xff]
    %v981 = vld [vmem:[%s1 + $0x8] sm:$0xff]
    %v982 = vld [vmem:[%s1 + $0x10] sm:$0xff]
    %v983 = vld [vmem:[%s1 + $0x18] sm:$0xff]
    %v984 = vld [vmem:[%s1 + $0x20] sm:$0xff]
    %v985 = vld [vmem:[%s1 + $0x28] sm:$0xff]
    %v986 = vld [vmem:[%s1 + $0x30] sm:$0xff]
    %v987 = vld [vmem:[%s1 + $0x38] sm:$0xff]
    %v988 = vld [vmem:[%s1 + $0x40] sm:$0xff]
    %v989 = vld [vmem:[%s1 + $0x48] sm:$0xff]
    %v990 = vld [vmem:[%s1 + $0x50] sm:$0xff]
    %v991 = vld [vmem:[%s1 + $0x58] sm:$0xff]
    %v992 = vld [vmem:[%s1 + $0x60] sm:$0xff]
    %v993 = vld [vmem:[%s1 + $0x68] sm:$0xff]
    %v994 = vld [vmem:[%s1 + $0x70] sm:$0xff]
    %v995 = vld [vmem:[%s1 + $0x78] sm:$0xff]
    %v996 = vunpack.c.l.bf16 %v980
    %v997 = vunpack.c.h.bf16 %v980
    %v998 = vunpack.c.l.bf16 %v981
    %v999 = vunpack.c.h.bf16 %v981
    %v1000 = vunpack.c.l.bf16 %v982
    %v1001 = vunpack.c.h.bf16 %v982
    %v1002 = vunpack.c.l.bf16 %v983
    %v1003 = vunpack.c.h.bf16 %v983
    %v1004 = vunpack.c.l.bf16 %v984
    %v1005 = vunpack.c.h.bf16 %v984
    %v1006 = vunpack.c.l.bf16 %v985
    %v1007 = vunpack.c.h.bf16 %v985
    %v1008 = vunpack.c.l.bf16 %v986
    %v1009 = vunpack.c.h.bf16 %v986
    %v1010 = vunpack.c.l.bf16 %v987
    %v1011 = vunpack.c.h.bf16 %v987
    %v1012 = vunpack.c.l.bf16 %v988
    %v1013 = vunpack.c.h.bf16 %v988
    %v1014 = vunpack.c.l.bf16 %v989
    %v1015 = vunpack.c.h.bf16 %v989
    %v1016 = vunpack.c.l.bf16 %v990
    %v1017 = vunpack.c.h.bf16 %v990
    %v1018 = vunpack.c.l.bf16 %v991
    %v1019 = vunpack.c.h.bf16 %v991
    %v1020 = vunpack.c.l.bf16 %v992
    %v1021 = vunpack.c.h.bf16 %v992
    %v1022 = vunpack.c.l.bf16 %v993
    %v1023 = vunpack.c.h.bf16 %v993
    %v1024 = vunpack.c.l.bf16 %v994
    %v1025 = vunpack.c.h.bf16 %v994
    %v1026 = vunpack.c.l.bf16 %v995
    %v1027 = vunpack.c.h.bf16 %v995
    %v1028 = vld [vmem:[%s2] sm:$0xff]
    %v1029 = vld [vmem:[%s2 + $0x8] sm:$0xff]
    %v1030 = vld [vmem:[%s2 + $0x10] sm:$0xff]
    %v1031 = vld [vmem:[%s2 + $0x18] sm:$0xff]
    %v1032 = vld [vmem:[%s2 + $0x20] sm:$0xff]
    %v1033 = vld [vmem:[%s2 + $0x28] sm:$0xff]
    %v1034 = vld [vmem:[%s2 + $0x30] sm:$0xff]
    %v1035 = vld [vmem:[%s2 + $0x38] sm:$0xff]
    %v1036 = vld [vmem:[%s2 + $0x40] sm:$0xff]
    %v1037 = vld [vmem:[%s2 + $0x48] sm:$0xff]
    %v1038 = vld [vmem:[%s2 + $0x50] sm:$0xff]
    %v1039 = vld [vmem:[%s2 + $0x58] sm:$0xff]
    %v1040 = vld [vmem:[%s2 + $0x60] sm:$0xff]
    %v1041 = vld [vmem:[%s2 + $0x68] sm:$0xff]
    %v1042 = vld [vmem:[%s2 + $0x70] sm:$0xff]
    %v1043 = vld [vmem:[%s2 + $0x78] sm:$0xff]
    %v1044 = vunpack.c.l.bf16 %v1028
    %v1045 = vunpack.c.h.bf16 %v1028
    %v1046 = vunpack.c.l.bf16 %v1029
    %v1047 = vunpack.c.h.bf16 %v1029
    %v1048 = vunpack.c.l.bf16 %v1030
    %v1049 = vunpack.c.h.bf16 %v1030
    %v1050 = vunpack.c.l.bf16 %v1031
    %v1051 = vunpack.c.h.bf16 %v1031
    %v1052 = vunpack.c.l.bf16 %v1032
    %v1053 = vunpack.c.h.bf16 %v1032
    %v1054 = vunpack.c.l.bf16 %v1033
    %v1055 = vunpack.c.h.bf16 %v1033
    %v1056 = vunpack.c.l.bf16 %v1034
    %v1057 = vunpack.c.h.bf16 %v1034
    %v1058 = vunpack.c.l.bf16 %v1035
    %v1059 = vunpack.c.h.bf16 %v1035
    %v1060 = vunpack.c.l.bf16 %v1036
    %v1061 = vunpack.c.h.bf16 %v1036
    %v1062 = vunpack.c.l.bf16 %v1037
    %v1063 = vunpack.c.h.bf16 %v1037
    %v1064 = vunpack.c.l.bf16 %v1038
    %v1065 = vunpack.c.h.bf16 %v1038
    %v1066 = vunpack.c.l.bf16 %v1039
    %v1067 = vunpack.c.h.bf16 %v1039
    %v1068 = vunpack.c.l.bf16 %v1040
    %v1069 = vunpack.c.h.bf16 %v1040
    %v1070 = vunpack.c.l.bf16 %v1041
    %v1071 = vunpack.c.h.bf16 %v1041
    %v1072 = vunpack.c.l.bf16 %v1042
    %v1073 = vunpack.c.h.bf16 %v1042
    %v1074 = vunpack.c.l.bf16 %v1043
    %v1075 = vunpack.c.h.bf16 %v1043
    %v1076 = vmul.f32 %v996, %v913
    %v1077 = vmul.f32 %v997, %v39
    %v1078 = vmul.f32 %v998, %v914
    %v1079 = vmul.f32 %v999, %v40
    %v1080 = vmul.f32 %v1000, %v915
    %v1081 = vmul.f32 %v1001, %v41
    %v1082 = vmul.f32 %v1002, %v916
    %v1083 = vmul.f32 %v1003, %v42
    %v1084 = vmul.f32 %v1004, %v917
    %v1085 = vmul.f32 %v1005, %v43
    %v1086 = vmul.f32 %v1006, %v918
    %v1087 = vmul.f32 %v1007, %v44
    %v1088 = vmul.f32 %v1008, %v919
    %v1089 = vmul.f32 %v1009, %v45
    %v1090 = vmul.f32 %v1010, %v920
    %v1091 = vmul.f32 %v1011, %v46
    %v1092 = vmul.f32 %v1012, %v921
    %v1093 = vmul.f32 %v1013, %v47
    %v1094 = vmul.f32 %v1014, %v922
    %v1095 = vmul.f32 %v1015, %v48
    %v1096 = vmul.f32 %v1016, %v923
    %v1097 = vmul.f32 %v1017, %v49
    %v1098 = vmul.f32 %v1018, %v924
    %v1099 = vmul.f32 %v1019, %v50
    %v1100 = vmul.f32 %v1020, %v925
    %v1101 = vmul.f32 %v1021, %v51
    %v1102 = vmul.f32 %v1022, %v926
    %v1103 = vmul.f32 %v1023, %v52
    %v1104 = vmul.f32 %v1024, %v927
    %v1105 = vmul.f32 %v1025, %v53
    %v1106 = vmul.f32 %v1026, %v928
    %v1107 = vmul.f32 %v1027, %v54
    %v1109 = vsel %vm282, %v1077, 0
    %v1112 = vsel %vm282, %v1079, 0
    %v1115 = vsel %vm282, %v1081, 0
    %v1118 = vsel %vm282, %v1083, 0
    %v1121 = vsel %vm282, %v1085, 0
    %v1124 = vsel %vm282, %v1087, 0
    %v1127 = vsel %vm282, %v1089, 0
    %v1130 = vsel %vm282, %v1091, 0
    %v1133 = vsel %vm282, %v1093, 0
    %v1136 = vsel %vm282, %v1095, 0
    %v1139 = vsel %vm282, %v1097, 0
    %v1142 = vsel %vm282, %v1099, 0
    %v1145 = vsel %vm282, %v1101, 0
    %v1148 = vsel %vm282, %v1103, 0
    %v1151 = vsel %vm282, %v1105, 0
    %v1154 = vsel %vm282, %v1107, 0
    %1156 = vmatprep.subr.mxu0 0.0
    %1157 = vmatpush1.msra.mxu0 %v929
    %1158 = vmatprep.subr.mxu0 0.0
    %1159 = vmatpush1.msra.mxu0 %v930
    %1160 = vmatprep.subr.mxu0 0.0
    %1161 = vmatpush1.msra.mxu0 %v931
    %1162 = vmatprep.subr.mxu0 0.0
    %1163 = vmatpush1.msra.mxu0 %v932
    %1164 = vmatprep.subr.mxu0 0.0
    %1165 = vmatpush1.msra.mxu0 %v933
    %1166 = vmatprep.subr.mxu0 0.0
    %1167 = vmatpush1.msra.mxu0 %v934
    %1168 = vmatprep.subr.mxu0 0.0
    %1169 = vmatpush1.msra.mxu0 %v935
    %1170 = vmatprep.subr.mxu0 0.0
    %1171 = vmatpush1.msra.mxu0 %v936
    %1172 = vmatprep.subr.mxu0 0.0
    %1173 = vmatpush1.msra.mxu0 %v937
    %1174 = vmatprep.subr.mxu0 0.0
    %1175 = vmatpush1.msra.mxu0 %v938
    %1176 = vmatprep.subr.mxu0 0.0
    %1177 = vmatpush1.msra.mxu0 %v939
    %1178 = vmatprep.subr.mxu0 0.0
    %1179 = vmatpush1.msra.mxu0 %v940
    %1180 = vmatprep.subr.mxu0 0.0
    %1181 = vmatpush1.msra.mxu0 %v941
    %1182 = vmatprep.subr.mxu0 0.0
    %1183 = vmatpush1.msra.mxu0 %v942
    %1184 = vmatprep.subr.mxu0 0.0
    %1185 = vmatpush1.msra.mxu0 %v943
    %1186 = vmatprep.subr.mxu0 0.0
    %1187 = vmatpush1.msra.mxu0 %v944
    %1188 = vmatprep.subr.mxu0 0.0
    %1189 = vmatpush1.msra.mxu0 %v945
    %1190 = vmatprep.subr.mxu0 0.0
    %1191 = vmatpush1.msra.mxu0 %v946
    %1192 = vmatprep.subr.mxu0 0.0
    %1193 = vmatpush1.msra.mxu0 0.0
    %1194 = vmatprep.subr.mxu0 0.0
    %1195 = vmatpush1.msra.mxu0 0.0
    %1196 = vmatprep.subr.mxu0 0.0
    %1197 = vmatpush1.msra.mxu0 0.0
    %1198 = vmatprep.subr.mxu0 0.0
    %1199 = vmatpush1.msra.mxu0 0.0
    %1200 = vmatprep.subr.mxu0 0.0
    %1201 = vmatpush1.msra.mxu0 0.0
    %1202 = vmatprep.subr.mxu0 0.0
    %1203 = vmatpush1.msra.mxu0 0.0
    %1204 = vmatprep.subr.mxu0 0.0
    %1205 = vmatpush1.msra.mxu0 0.0
    %1206 = vmatprep.subr.mxu0 0.0
    %1207 = vmatpush1.msra.mxu0 0.0
    %1208 = vmatprep.subr.mxu0 0.0
    %1209 = vmatpush1.msra.mxu0 0.0
    %1210 = vmatprep.subr.mxu0 0.0
    %1211 = vmatpush1.msra.mxu0 0.0
    %1212 = vmatprep.subr.mxu0 0.0
    %1213 = vmatpush1.msra.mxu0 0.0
    %1214 = vmatprep.subr.mxu0 0.0
    %1215 = vmatpush1.msra.mxu0 0.0
    %1216 = vmatprep.subr.mxu0 0.0
    %1217 = vmatpush1.msra.mxu0 0.0
    %1218 = vmatprep.subr.mxu0 0.0
    %1219 = vmatpush1.msra.mxu0 0.0
    %1220 = vmatprep.mubr.f32.mxu0 %v1109
    %1221 = vmatmul.mubr.f32.gmra.mrb[0].mxu0 %v1076
    %v1222 = vpop.f32.mrb[0].mxu0
    %v1223 = vadd.f32 %v398, %v1222
    %v1224 = vpop.f32.mrb[0].mxu0
    %1225 = vmatprep.mubr.f32.mxu0 %v1112
    %1226 = vmatmul.mubr.f32.gmra.mrb[0].mxu0 %v1078
    %v1227 = vpop.f32.mrb[0].mxu0
    %v1228 = vadd.f32 %v403, %v1227
    %v1229 = vpop.f32.mrb[0].mxu0
    %1230 = vmatprep.mubr.f32.mxu0 %v1115
    %1231 = vmatmul.mubr.f32.gmra.mrb[0].mxu0 %v1080
    %v1232 = vpop.f32.mrb[0].mxu0
    %v1233 = vadd.f32 %v408, %v1232
    %v1234 = vpop.f32.mrb[0].mxu0
    %1235 = vmatprep.mubr.f32.mxu0 %v1118
    %1236 = vmatmul.mubr.f32.gmra.mrb[0].mxu0 %v1082
    %v1237 = vpop.f32.mrb[0].mxu0
    %v1238 = vadd.f32 %v413, %v1237
    %v1239 = vpop.f32.mrb[0].mxu0
    %1240 = vmatprep.mubr.f32.mxu0 %v1121
    %1241 = vmatmul.mubr.f32.gmra.mrb[0].mxu0 %v1084
    %v1242 = vpop.f32.mrb[0].mxu0
    %v1243 = vadd.f32 %v418, %v1242
    %v1244 = vpop.f32.mrb[0].mxu0
    %1245 = vmatprep.mubr.f32.mxu0 %v1124
    %1246 = vmatmul.mubr.f32.gmra.mrb[0].mxu0 %v1086
    %v1247 = vpop.f32.mrb[0].mxu0
    %v1248 = vadd.f32 %v423, %v1247
    %v1249 = vpop.f32.mrb[0].mxu0
    %1250 = vmatprep.mubr.f32.mxu0 %v1127
    %1251 = vmatmul.mubr.f32.gmra.mrb[0].mxu0 %v1088
    %v1252 = vpop.f32.mrb[0].mxu0
    %v1253 = vadd.f32 %v428, %v1252
    %v1254 = vpop.f32.mrb[0].mxu0
    %1255 = vmatprep.mubr.f32.mxu0 %v1130
    %1256 = vmatmul.mubr.f32.gmra.mrb[0].mxu0 %v1090
    %v1257 = vpop.f32.mrb[0].mxu0
    %v1258 = vadd.f32 %v433, %v1257
    %v1259 = vpop.f32.mrb[0].mxu0
    %1260 = vmatprep.mubr.f32.mxu0 %v1133
    %1261 = vmatmul.mubr.f32.gmra.mrb[0].mxu0 %v1092
    %v1262 = vpop.f32.mrb[0].mxu0
    %v1263 = vadd.f32 %v438, %v1262
    %v1264 = vpop.f32.mrb[0].mxu0
    %1265 = vmatprep.mubr.f32.mxu0 %v1136
    %1266 = vmatmul.mubr.f32.gmra.mrb[0].mxu0 %v1094
    %v1267 = vpop.f32.mrb[0].mxu0
    %v1268 = vadd.f32 %v443, %v1267
    %v1269 = vpop.f32.mrb[0].mxu0
    %1270 = vmatprep.mubr.f32.mxu0 %v1139
    %1271 = vmatmul.mubr.f32.gmra.mrb[0].mxu0 %v1096
    %v1272 = vpop.f32.mrb[0].mxu0
    %v1273 = vadd.f32 %v448, %v1272
    %v1274 = vpop.f32.mrb[0].mxu0
    %1275 = vmatprep.mubr.f32.mxu0 %v1142
    %1276 = vmatmul.mubr.f32.gmra.mrb[0].mxu0 %v1098
    %v1277 = vpop.f32.mrb[0].mxu0
    %v1278 = vadd.f32 %v453, %v1277
    %v1279 = vpop.f32.mrb[0].mxu0
    %1280 = vmatprep.mubr.f32.mxu0 %v1145
    %1281 = vmatmul.mubr.f32.gmra.mrb[0].mxu0 %v1100
    %v1282 = vpop.f32.mrb[0].mxu0
    %v1283 = vadd.f32 %v458, %v1282
    %v1284 = vpop.f32.mrb[0].mxu0
    %1285 = vmatprep.mubr.f32.mxu0 %v1148
    %1286 = vmatmul.mubr.f32.gmra.mrb[0].mxu0 %v1102
    %v1287 = vpop.f32.mrb[0].mxu0
    %v1288 = vadd.f32 %v463, %v1287
    %v1289 = vpop.f32.mrb[0].mxu0
    %1290 = vmatprep.mubr.f32.mxu0 %v1151
    %1291 = vmatmul.mubr.f32.gmra.mrb[0].mxu0 %v1104
    %v1292 = vpop.f32.mrb[0].mxu0
    %v1293 = vadd.f32 %v468, %v1292
    %v1294 = vpop.f32.mrb[0].mxu0
    %1295 = vmatprep.mubr.f32.mxu0 %v1154
    %1296 = vmatmul.mubr.f32.gmra.mrb[0].mxu0 %v1106
    %v1297 = vpop.f32.mrb[0].mxu0
    %v1298 = vadd.f32 %v473, %v1297
    %v1299 = vpop.f32.mrb[0].mxu0
    %1300 = vdwg.mxu0
    %vm1301 = vcmask 72704
    %v1302 = vsel %vm1301, %v1223, -inf
    %1303 = vmax.xlane.f32.xlu0 %v1302
    %v1304 = vpop.xlane.xlu0 %1303
    %v1305 = vsel %vm1301, %v1228, -inf
    %1306 = vmax.xlane.f32.xlu0 %v1305
    %v1307 = vpop.xlane.xlu0 %1306
    %v1308 = vsel %vm1301, %v1233, -inf
    %1309 = vmax.xlane.f32.xlu0 %v1308
    %v1310 = vpop.xlane.xlu0 %1309
    %v1311 = vsel %vm1301, %v1238, -inf
    %1312 = vmax.xlane.f32.xlu0 %v1311
    %v1313 = vpop.xlane.xlu0 %1312
    %v1314 = vsel %vm1301, %v1243, -inf
    %1315 = vmax.xlane.f32.xlu0 %v1314
    %v1316 = vpop.xlane.xlu0 %1315
    %v1317 = vsel %vm1301, %v1248, -inf
    %1318 = vmax.xlane.f32.xlu0 %v1317
    %v1319 = vpop.xlane.xlu0 %1318
    %v1320 = vsel %vm1301, %v1253, -inf
    %1321 = vmax.xlane.f32.xlu0 %v1320
    %v1322 = vpop.xlane.xlu0 %1321
    %v1323 = vsel %vm1301, %v1258, -inf
    %1324 = vmax.xlane.f32.xlu0 %v1323
    %v1325 = vpop.xlane.xlu0 %1324
    %v1326 = vsel %vm1301, %v1263, -inf
    %1327 = vmax.xlane.f32.xlu0 %v1326
    %v1328 = vpop.xlane.xlu0 %1327
    %v1329 = vsel %vm1301, %v1268, -inf
    %1330 = vmax.xlane.f32.xlu0 %v1329
    %v1331 = vpop.xlane.xlu0 %1330
    %v1332 = vsel %vm1301, %v1273, -inf
    %1333 = vmax.xlane.f32.xlu0 %v1332
    %v1334 = vpop.xlane.xlu0 %1333
    %v1335 = vsel %vm1301, %v1278, -inf
    %1336 = vmax.xlane.f32.xlu0 %v1335
    %v1337 = vpop.xlane.xlu0 %1336
    %v1338 = vsel %vm1301, %v1283, -inf
    %1339 = vmax.xlane.f32.xlu0 %v1338
    %v1340 = vpop.xlane.xlu0 %1339
    %v1341 = vsel %vm1301, %v1288, -inf
    %1342 = vmax.xlane.f32.xlu0 %v1341
    %v1343 = vpop.xlane.xlu0 %1342
    %v1344 = vsel %vm1301, %v1293, -inf
    %1345 = vmax.xlane.f32.xlu0 %v1344
    %v1346 = vpop.xlane.xlu0 %1345
    %v1347 = vsel %vm1301, %v1298, -inf
    %1348 = vmax.xlane.f32.xlu0 %v1347
    %v1349 = vpop.xlane.xlu0 %1348
    %vm1350 = vcmask 146504
    %v1351 = vsel %vm1350, %v1223, -inf
    %1352 = vmax.xlane.f32.xlu0 %v1351
    %v1353 = vpop.xlane.xlu0 %1352
    %v1354 = vsel %vm1350, %v1228, -inf
    %1355 = vmax.xlane.f32.xlu0 %v1354
    %v1356 = vpop.xlane.xlu0 %1355
    %v1357 = vsel %vm1350, %v1233, -inf
    %1358 = vmax.xlane.f32.xlu0 %v1357
    %v1359 = vpop.xlane.xlu0 %1358
    %v1360 = vsel %vm1350, %v1238, -inf
    %1361 = vmax.xlane.f32.xlu0 %v1360
    %v1362 = vpop.xlane.xlu0 %1361
    %v1363 = vsel %vm1350, %v1243, -inf
    %1364 = vmax.xlane.f32.xlu0 %v1363
    %v1365 = vpop.xlane.xlu0 %1364
    %v1366 = vsel %vm1350, %v1248, -inf
    %1367 = vmax.xlane.f32.xlu0 %v1366
    %v1368 = vpop.xlane.xlu0 %1367
    %v1369 = vsel %vm1350, %v1253, -inf
    %1370 = vmax.xlane.f32.xlu0 %v1369
    %v1371 = vpop.xlane.xlu0 %1370
    %v1372 = vsel %vm1350, %v1258, -inf
    %1373 = vmax.xlane.f32.xlu0 %v1372
    %v1374 = vpop.xlane.xlu0 %1373
    %v1375 = vsel %vm1350, %v1263, -inf
    %1376 = vmax.xlane.f32.xlu0 %v1375
    %v1377 = vpop.xlane.xlu0 %1376
    %v1378 = vsel %vm1350, %v1268, -inf
    %1379 = vmax.xlane.f32.xlu0 %v1378
    %v1380 = vpop.xlane.xlu0 %1379
    %v1381 = vsel %vm1350, %v1273, -inf
    %1382 = vmax.xlane.f32.xlu0 %v1381
    %v1383 = vpop.xlane.xlu0 %1382
    %v1384 = vsel %vm1350, %v1278, -inf
    %1385 = vmax.xlane.f32.xlu0 %v1384
    %v1386 = vpop.xlane.xlu0 %1385
    %v1387 = vsel %vm1350, %v1283, -inf
    %1388 = vmax.xlane.f32.xlu0 %v1387
    %v1389 = vpop.xlane.xlu0 %1388
    %v1390 = vsel %vm1350, %v1288, -inf
    %1391 = vmax.xlane.f32.xlu0 %v1390
    %v1392 = vpop.xlane.xlu0 %1391
    %v1393 = vsel %vm1350, %v1293, -inf
    %1394 = vmax.xlane.f32.xlu0 %v1393
    %v1395 = vpop.xlane.xlu0 %1394
    %v1396 = vsel %vm1350, %v1298, -inf
    %1397 = vmax.xlane.f32.xlu0 %v1396
    %v1398 = vpop.xlane.xlu0 %1397
    %vm1399 = vcmask 220304
    %v1400 = vsel %vm1399, %v1223, -inf
    %1401 = vmax.xlane.f32.xlu0 %v1400
    %v1402 = vpop.xlane.xlu0 %1401
    %v1403 = vsel %vm1399, %v1228, -inf
    %1404 = vmax.xlane.f32.xlu0 %v1403
    %v1405 = vpop.xlane.xlu0 %1404
    %v1406 = vsel %vm1399, %v1233, -inf
    %1407 = vmax.xlane.f32.xlu0 %v1406
    %v1408 = vpop.xlane.xlu0 %1407
    %v1409 = vsel %vm1399, %v1238, -inf
    %1410 = vmax.xlane.f32.xlu0 %v1409
    %v1411 = vpop.xlane.xlu0 %1410
    %v1412 = vsel %vm1399, %v1243, -inf
    %1413 = vmax.xlane.f32.xlu0 %v1412
    %v1414 = vpop.xlane.xlu0 %1413
    %v1415 = vsel %vm1399, %v1248, -inf
    %1416 = vmax.xlane.f32.xlu0 %v1415
    %v1417 = vpop.xlane.xlu0 %1416
    %v1418 = vsel %vm1399, %v1253, -inf
    %1419 = vmax.xlane.f32.xlu0 %v1418
    %v1420 = vpop.xlane.xlu0 %1419
    %v1421 = vsel %vm1399, %v1258, -inf
    %1422 = vmax.xlane.f32.xlu0 %v1421
    %v1423 = vpop.xlane.xlu0 %1422
    %v1424 = vsel %vm1399, %v1263, -inf
    %1425 = vmax.xlane.f32.xlu0 %v1424
    %v1426 = vpop.xlane.xlu0 %1425
    %v1427 = vsel %vm1399, %v1268, -inf
    %1428 = vmax.xlane.f32.xlu0 %v1427
    %v1429 = vpop.xlane.xlu0 %1428
    %v1430 = vsel %vm1399, %v1273, -inf
    %1431 = vmax.xlane.f32.xlu0 %v1430
    %v1432 = vpop.xlane.xlu0 %1431
    %v1433 = vsel %vm1399, %v1278, -inf
    %1434 = vmax.xlane.f32.xlu0 %v1433
    %v1435 = vpop.xlane.xlu0 %1434
    %v1436 = vsel %vm1399, %v1283, -inf
    %1437 = vmax.xlane.f32.xlu0 %v1436
    %v1438 = vpop.xlane.xlu0 %1437
    %v1439 = vsel %vm1399, %v1288, -inf
    %1440 = vmax.xlane.f32.xlu0 %v1439
    %v1441 = vpop.xlane.xlu0 %1440
    %v1442 = vsel %vm1399, %v1293, -inf
    %1443 = vmax.xlane.f32.xlu0 %v1442
    %v1444 = vpop.xlane.xlu0 %1443
    %v1445 = vsel %vm1399, %v1298, -inf
    %1446 = vmax.xlane.f32.xlu0 %v1445
    %v1447 = vpop.xlane.xlu0 %1446
    %vm1448 = vcmask 294104
    %v1449 = vsel %vm1448, %v1223, -inf
    %1450 = vmax.xlane.f32.xlu0 %v1449
    %v1451 = vpop.xlane.xlu0 %1450
    %v1452 = vsel %vm1448, %v1228, -inf
    %1453 = vmax.xlane.f32.xlu0 %v1452
    %v1454 = vpop.xlane.xlu0 %1453
    %v1455 = vsel %vm1448, %v1233, -inf
    %1456 = vmax.xlane.f32.xlu0 %v1455
    %v1457 = vpop.xlane.xlu0 %1456
    %v1458 = vsel %vm1448, %v1238, -inf
    %1459 = vmax.xlane.f32.xlu0 %v1458
    %v1460 = vpop.xlane.xlu0 %1459
    %v1461 = vsel %vm1448, %v1243, -inf
    %1462 = vmax.xlane.f32.xlu0 %v1461
    %v1463 = vpop.xlane.xlu0 %1462
    %v1464 = vsel %vm1448, %v1248, -inf
    %1465 = vmax.xlane.f32.xlu0 %v1464
    %v1466 = vpop.xlane.xlu0 %1465
    %v1467 = vsel %vm1448, %v1253, -inf
    %1468 = vmax.xlane.f32.xlu0 %v1467
    %v1469 = vpop.xlane.xlu0 %1468
    %v1470 = vsel %vm1448, %v1258, -inf
    %1471 = vmax.xlane.f32.xlu0 %v1470
    %v1472 = vpop.xlane.xlu0 %1471
    %v1473 = vsel %vm1448, %v1263, -inf
    %1474 = vmax.xlane.f32.xlu0 %v1473
    %v1475 = vpop.xlane.xlu0 %1474
    %v1476 = vsel %vm1448, %v1268, -inf
    %1477 = vmax.xlane.f32.xlu0 %v1476
    %v1478 = vpop.xlane.xlu0 %1477
    %v1479 = vsel %vm1448, %v1273, -inf
    %1480 = vmax.xlane.f32.xlu0 %v1479
    %v1481 = vpop.xlane.xlu0 %1480
    %v1482 = vsel %vm1448, %v1278, -inf
    %1483 = vmax.xlane.f32.xlu0 %v1482
    %v1484 = vpop.xlane.xlu0 %1483
    %v1485 = vsel %vm1448, %v1283, -inf
    %1486 = vmax.xlane.f32.xlu0 %v1485
    %v1487 = vpop.xlane.xlu0 %1486
    %v1488 = vsel %vm1448, %v1288, -inf
    %1489 = vmax.xlane.f32.xlu0 %v1488
    %v1490 = vpop.xlane.xlu0 %1489
    %v1491 = vsel %vm1448, %v1293, -inf
    %1492 = vmax.xlane.f32.xlu0 %v1491
    %v1493 = vpop.xlane.xlu0 %1492
    %v1494 = vsel %vm1448, %v1298, -inf
    %1495 = vmax.xlane.f32.xlu0 %v1494
    %v1496 = vpop.xlane.xlu0 %1495
    %v1497 = vsel %vm1301, %v1304, %v1353
    %v1498 = vsel %vm1301, %v1307, %v1356
    %v1499 = vsel %vm1301, %v1310, %v1359
    %v1500 = vsel %vm1301, %v1313, %v1362
    %v1501 = vsel %vm1301, %v1316, %v1365
    %v1502 = vsel %vm1301, %v1319, %v1368
    %v1503 = vsel %vm1301, %v1322, %v1371
    %v1504 = vsel %vm1301, %v1325, %v1374
    %v1505 = vsel %vm1301, %v1328, %v1377
    %v1506 = vsel %vm1301, %v1331, %v1380
    %v1507 = vsel %vm1301, %v1334, %v1383
    %v1508 = vsel %vm1301, %v1337, %v1386
    %v1509 = vsel %vm1301, %v1340, %v1389
    %v1510 = vsel %vm1301, %v1343, %v1392
    %v1511 = vsel %vm1301, %v1346, %v1395
    %v1512 = vsel %vm1301, %v1349, %v1398
    %vm1513 = vcmask 146432
    %v1514 = vsel %vm1513, %v1497, %v1402
    %v1515 = vsel %vm1513, %v1498, %v1405
    %v1516 = vsel %vm1513, %v1499, %v1408
    %v1517 = vsel %vm1513, %v1500, %v1411
    %v1518 = vsel %vm1513, %v1501, %v1414
    %v1519 = vsel %vm1513, %v1502, %v1417
    %v1520 = vsel %vm1513, %v1503, %v1420
    %v1521 = vsel %vm1513, %v1504, %v1423
    %v1522 = vsel %vm1513, %v1505, %v1426
    %v1523 = vsel %vm1513, %v1506, %v1429
    %v1524 = vsel %vm1513, %v1507, %v1432
    %v1525 = vsel %vm1513, %v1508, %v1435
    %v1526 = vsel %vm1513, %v1509, %v1438
    %v1527 = vsel %vm1513, %v1510, %v1441
    %v1528 = vsel %vm1513, %v1511, %v1444
    %v1529 = vsel %vm1513, %v1512, %v1447
    %vm1530 = vcmask 220160
    %v1531 = vsel %vm1530, %v1514, %v1451
    %v1532 = vsel %vm1530, %v1515, %v1454
    %v1533 = vsel %vm1530, %v1516, %v1457
    %v1534 = vsel %vm1530, %v1517, %v1460
    %v1535 = vsel %vm1530, %v1518, %v1463
    %v1536 = vsel %vm1530, %v1519, %v1466
    %v1537 = vsel %vm1530, %v1520, %v1469
    %v1538 = vsel %vm1530, %v1521, %v1472
    %v1539 = vsel %vm1530, %v1522, %v1475
    %v1540 = vsel %vm1530, %v1523, %v1478
    %v1541 = vsel %vm1530, %v1524, %v1481
    %v1542 = vsel %vm1530, %v1525, %v1484
    %v1543 = vsel %vm1530, %v1526, %v1487
    %v1544 = vsel %vm1530, %v1527, %v1490
    %v1545 = vsel %vm1530, %v1528, %v1493
    %v1546 = vsel %vm1530, %v1529, %v1496
    %v1547 = vsub.f32 %v1223, %v1531
    %v1548 = vsub.f32 %v1228, %v1532
    %v1549 = vsub.f32 %v1233, %v1533
    %v1550 = vsub.f32 %v1238, %v1534
    %v1551 = vsub.f32 %v1243, %v1535
    %v1552 = vsub.f32 %v1248, %v1536
    %v1553 = vsub.f32 %v1253, %v1537
    %v1554 = vsub.f32 %v1258, %v1538
    %v1555 = vsub.f32 %v1263, %v1539
    %v1556 = vsub.f32 %v1268, %v1540
    %v1557 = vsub.f32 %v1273, %v1541
    %v1558 = vsub.f32 %v1278, %v1542
    %v1559 = vsub.f32 %v1283, %v1543
    %v1560 = vsub.f32 %v1288, %v1544
    %v1561 = vsub.f32 %v1293, %v1545
    %v1562 = vsub.f32 %v1298, %v1546
    %v1563 = vmul.f32 %v1547, 1.442695
    %v1564 = vpow.pop %v1563
    %v1565 = vmul.f32 %v1548, 1.442695
    %v1566 = vpow.pop %v1565
    %v1567 = vmul.f32 %v1549, 1.442695
    %v1568 = vpow.pop %v1567
    %v1569 = vmul.f32 %v1550, 1.442695
    %v1570 = vpow.pop %v1569
    %v1571 = vmul.f32 %v1551, 1.442695
    %v1572 = vpow.pop %v1571
    %v1573 = vmul.f32 %v1552, 1.442695
    %v1574 = vpow.pop %v1573
    %v1575 = vmul.f32 %v1553, 1.442695
    %v1576 = vpow.pop %v1575
    %v1577 = vmul.f32 %v1554, 1.442695
    %v1578 = vpow.pop %v1577
    %v1579 = vmul.f32 %v1555, 1.442695
    %v1580 = vpow.pop %v1579
    %v1581 = vmul.f32 %v1556, 1.442695
    %v1582 = vpow.pop %v1581
    %v1583 = vmul.f32 %v1557, 1.442695
    %v1584 = vpow.pop %v1583
    %v1585 = vmul.f32 %v1558, 1.442695
    %v1586 = vpow.pop %v1585
    %v1587 = vmul.f32 %v1559, 1.442695
    %v1588 = vpow.pop %v1587
    %v1589 = vmul.f32 %v1560, 1.442695
    %v1590 = vpow.pop %v1589
    %v1591 = vmul.f32 %v1561, 1.442695
    %v1592 = vpow.pop %v1591
    %v1593 = vmul.f32 %v1562, 1.442695
    %v1594 = vpow.pop %v1593
    %vm1595 = vcmask 293888
    %v1597 = vsel %vm1595, %v1564, 0
    %v1600 = vsel %vm1595, %v1566, 0
    %v1603 = vsel %vm1595, %v1568, 0
    %v1606 = vsel %vm1595, %v1570, 0
    %v1609 = vsel %vm1595, %v1572, 0
    %v1612 = vsel %vm1595, %v1574, 0
    %v1615 = vsel %vm1595, %v1576, 0
    %v1618 = vsel %vm1595, %v1578, 0
    %v1621 = vsel %vm1595, %v1580, 0
    %v1624 = vsel %vm1595, %v1582, 0
    %v1627 = vsel %vm1595, %v1584, 0
    %v1630 = vsel %vm1595, %v1586, 0
    %v1633 = vsel %vm1595, %v1588, 0
    %v1636 = vsel %vm1595, %v1590, 0
    %v1639 = vsel %vm1595, %v1592, 0
    %v1642 = vsel %vm1595, %v1594, 0
    %vm1644 = vcmask 1043456
    %v1646 = vsel %vm1644, %v961, 0
    %1648 = vmatprep.subr.mxu0 0.0
    %1649 = vmatpush1.msra.mxu0 %v957
    %1650 = vmatprep.subr.mxu0 0.0
    %1651 = vmatpush1.msra.mxu0 %v958
    %1652 = vmatprep.subr.mxu0 0.0
    %1653 = vmatpush1.msra.mxu0 %v959
    %1654 = vmatprep.subr.mxu0 0.0
    %1655 = vmatpush1.msra.mxu0 %v960
    %1656 = vmatprep.subr.mxu0 0.0
    %1657 = vmatpush1.msra.mxu0 %v1646
    %1658 = vmatprep.subr.mxu0 0.0
    %1659 = vmatpush1.msra.mxu0 0.0
    %1660 = vmatprep.subr.mxu0 0.0
    %1661 = vmatpush1.msra.mxu0 0.0
    %1662 = vmatprep.subr.mxu0 0.0
    %1663 = vmatpush1.msra.mxu0 0.0
    %1664 = vmatprep.subr.mxu0 0.0
    %1665 = vmatpush1.msra.mxu0 0.0
    %1666 = vmatprep.subr.mxu0 0.0
    %1667 = vmatpush1.msra.mxu0 0.0
    %1668 = vmatprep.subr.mxu0 0.0
    %1669 = vmatpush1.msra.mxu0 0.0
    %1670 = vmatprep.subr.mxu0 0.0
    %1671 = vmatpush1.msra.mxu0 0.0
    %1672 = vmatprep.subr.mxu0 0.0
    %1673 = vmatpush1.msra.mxu0 0.0
    %1674 = vmatprep.subr.mxu0 0.0
    %1675 = vmatpush1.msra.mxu0 0.0
    %1676 = vmatprep.subr.mxu0 0.0
    %1677 = vmatpush1.msra.mxu0 0.0
    %1678 = vmatprep.subr.mxu0 0.0
    %1679 = vmatpush1.msra.mxu0 0.0
    %1680 = vmatprep.subr.mxu0 0.0
    %1681 = vmatpush1.msra.mxu0 0.0
    %1682 = vmatprep.subr.mxu0 0.0
    %1683 = vmatpush1.msra.mxu0 0.0
    %1684 = vmatprep.subr.mxu0 0.0
    %1685 = vmatpush1.msra.mxu0 0.0
    %1686 = vmatprep.subr.mxu0 0.0
    %1687 = vmatpush1.msra.mxu0 0.0
    %1688 = vmatprep.subr.mxu0 0.0
    %1689 = vmatpush1.msra.mxu0 0.0
    %1690 = vmatprep.subr.mxu0 0.0
    %1691 = vmatpush1.msra.mxu0 0.0
    %1692 = vmatprep.subr.mxu0 0.0
    %1693 = vmatpush1.msra.mxu0 0.0
    %1694 = vmatprep.subr.mxu0 0.0
    %1695 = vmatpush1.msra.mxu0 0.0
    %1696 = vmatprep.subr.mxu0 0.0
    %1697 = vmatpush1.msra.mxu0 0.0
    %1698 = vmatprep.subr.mxu0 0.0
    %1699 = vmatpush1.msra.mxu0 0.0
    %1700 = vmatprep.subr.mxu0 0.0
    %1701 = vmatpush1.msra.mxu0 0.0
    %1702 = vmatprep.subr.mxu0 0.0
    %1703 = vmatpush1.msra.mxu0 0.0
    %1704 = vmatprep.subr.mxu0 0.0
    %1705 = vmatpush1.msra.mxu0 0.0
    %1706 = vmatprep.subr.mxu0 0.0
    %1707 = vmatpush1.msra.mxu0 0.0
    %1708 = vmatprep.subr.mxu0 0.0
    %1709 = vmatpush1.msra.mxu0 0.0
    %1710 = vmatprep.subr.mxu0 0.0
    %1711 = vmatpush1.msra.mxu0 0.0
    %1712 = vmatprep.mubr.f32.mxu0 0.0
    %1713 = vmatmul.mubr.f32.gmra.mrb[0].mxu0 %v1597
    %v1714 = vpop.f32.mrb[0].mxu0
    %v1715 = vadd.f32 0.0, %v1714
    %v1716 = vpop.f32.mrb[0].mxu0
    %1717 = vmatprep.mubr.f32.mxu0 0.0
    %1718 = vmatmul.mubr.f32.gmra.mrb[0].mxu0 %v1600
    %v1719 = vpop.f32.mrb[0].mxu0
    %v1720 = vadd.f32 0.0, %v1719
    %v1721 = vpop.f32.mrb[0].mxu0
    %1722 = vmatprep.mubr.f32.mxu0 0.0
    %1723 = vmatmul.mubr.f32.gmra.mrb[0].mxu0 %v1603
    %v1724 = vpop.f32.mrb[0].mxu0
    %v1725 = vadd.f32 0.0, %v1724
    %v1726 = vpop.f32.mrb[0].mxu0
    %1727 = vmatprep.mubr.f32.mxu0 0.0
    %1728 = vmatmul.mubr.f32.gmra.mrb[0].mxu0 %v1606
    %v1729 = vpop.f32.mrb[0].mxu0
    %v1730 = vadd.f32 0.0, %v1729
    %v1731 = vpop.f32.mrb[0].mxu0
    %1732 = vmatprep.mubr.f32.mxu0 0.0
    %1733 = vmatmul.mubr.f32.gmra.mrb[0].mxu0 %v1609
    %v1734 = vpop.f32.mrb[0].mxu0
    %v1735 = vadd.f32 0.0, %v1734
    %v1736 = vpop.f32.mrb[0].mxu0
    %1737 = vmatprep.mubr.f32.mxu0 0.0
    %1738 = vmatmul.mubr.f32.gmra.mrb[0].mxu0 %v1612
    %v1739 = vpop.f32.mrb[0].mxu0
    %v1740 = vadd.f32 0.0, %v1739
    %v1741 = vpop.f32.mrb[0].mxu0
    %1742 = vmatprep.mubr.f32.mxu0 0.0
    %1743 = vmatmul.mubr.f32.gmra.mrb[0].mxu0 %v1615
    %v1744 = vpop.f32.mrb[0].mxu0
    %v1745 = vadd.f32 0.0, %v1744
    %v1746 = vpop.f32.mrb[0].mxu0
    %1747 = vmatprep.mubr.f32.mxu0 0.0
    %1748 = vmatmul.mubr.f32.gmra.mrb[0].mxu0 %v1618
    %v1749 = vpop.f32.mrb[0].mxu0
    %v1750 = vadd.f32 0.0, %v1749
    %v1751 = vpop.f32.mrb[0].mxu0
    %1752 = vmatprep.mubr.f32.mxu0 0.0
    %1753 = vmatmul.mubr.f32.gmra.mrb[0].mxu0 %v1621
    %v1754 = vpop.f32.mrb[0].mxu0
    %v1755 = vadd.f32 0.0, %v1754
    %v1756 = vpop.f32.mrb[0].mxu0
    %1757 = vmatprep.mubr.f32.mxu0 0.0
    %1758 = vmatmul.mubr.f32.gmra.mrb[0].mxu0 %v1624
    %v1759 = vpop.f32.mrb[0].mxu0
    %v1760 = vadd.f32 0.0, %v1759
    %v1761 = vpop.f32.mrb[0].mxu0
    %1762 = vmatprep.mubr.f32.mxu0 0.0
    %1763 = vmatmul.mubr.f32.gmra.mrb[0].mxu0 %v1627
    %v1764 = vpop.f32.mrb[0].mxu0
    %v1765 = vadd.f32 0.0, %v1764
    %v1766 = vpop.f32.mrb[0].mxu0
    %1767 = vmatprep.mubr.f32.mxu0 0.0
    %1768 = vmatmul.mubr.f32.gmra.mrb[0].mxu0 %v1630
    %v1769 = vpop.f32.mrb[0].mxu0
    %v1770 = vadd.f32 0.0, %v1769
    %v1771 = vpop.f32.mrb[0].mxu0
    %1772 = vmatprep.mubr.f32.mxu0 0.0
    %1773 = vmatmul.mubr.f32.gmra.mrb[0].mxu0 %v1633
    %v1774 = vpop.f32.mrb[0].mxu0
    %v1775 = vadd.f32 0.0, %v1774
    %v1776 = vpop.f32.mrb[0].mxu0
    %1777 = vmatprep.mubr.f32.mxu0 0.0
    %1778 = vmatmul.mubr.f32.gmra.mrb[0].mxu0 %v1636
    %v1779 = vpop.f32.mrb[0].mxu0
    %v1780 = vadd.f32 0.0, %v1779
    %v1781 = vpop.f32.mrb[0].mxu0
    %1782 = vmatprep.mubr.f32.mxu0 0.0
    %1783 = vmatmul.mubr.f32.gmra.mrb[0].mxu0 %v1639
    %v1784 = vpop.f32.mrb[0].mxu0
    %v1785 = vadd.f32 0.0, %v1784
    %v1786 = vpop.f32.mrb[0].mxu0
    %1787 = vmatprep.mubr.f32.mxu0 0.0
    %1788 = vmatmul.mubr.f32.gmra.mrb[0].mxu0 %v1642
    %v1789 = vpop.f32.mrb[0].mxu0
    %v1790 = vadd.f32 0.0, %v1789
    %v1791 = vpop.f32.mrb[0].mxu0
    %1792 = vdwg.mxu0
    %v1793 = vrcp.pop %v1715
    %v1794 = vrcp.pop %v1720
    %v1795 = vrcp.pop %v1725
    %v1796 = vrcp.pop %v1730
    %v1797 = vrcp.pop %v1735
    %v1798 = vrcp.pop %v1740
    %v1799 = vrcp.pop %v1745
    %v1800 = vrcp.pop %v1750
    %v1801 = vrcp.pop %v1755
    %v1802 = vrcp.pop %v1760
    %v1803 = vrcp.pop %v1765
    %v1804 = vrcp.pop %v1770
    %v1805 = vrcp.pop %v1775
    %v1806 = vrcp.pop %v1780
    %v1807 = vrcp.pop %v1785
    %v1808 = vrcp.pop %v1790
    %v1809 = vmul.f32 %v1564, %v1793
    %v1810 = vmul.f32 %v1566, %v1794
    %v1811 = vmul.f32 %v1568, %v1795
    %v1812 = vmul.f32 %v1570, %v1796
    %v1813 = vmul.f32 %v1572, %v1797
    %v1814 = vmul.f32 %v1574, %v1798
    %v1815 = vmul.f32 %v1576, %v1799
    %v1816 = vmul.f32 %v1578, %v1800
    %v1817 = vmul.f32 %v1580, %v1801
    %v1818 = vmul.f32 %v1582, %v1802
    %v1819 = vmul.f32 %v1584, %v1803
    %v1820 = vmul.f32 %v1586, %v1804
    %v1821 = vmul.f32 %v1588, %v1805
    %v1822 = vmul.f32 %v1590, %v1806
    %v1823 = vmul.f32 %v1592, %v1807
    %v1824 = vmul.f32 %v1594, %v1808
    %v1826 = vsel %vm1595, %v1809, 0
    %v1829 = vsel %vm1595, %v1810, 0
    %v1832 = vsel %vm1595, %v1811, 0
    %v1835 = vsel %vm1595, %v1812, 0
    %v1838 = vsel %vm1595, %v1813, 0
    %v1841 = vsel %vm1595, %v1814, 0
    %v1844 = vsel %vm1595, %v1815, 0
    %v1847 = vsel %vm1595, %v1816, 0
    %v1850 = vsel %vm1595, %v1817, 0
    %v1853 = vsel %vm1595, %v1818, 0
    %v1856 = vsel %vm1595, %v1819, 0
    %v1859 = vsel %vm1595, %v1820, 0
    %v1862 = vsel %vm1595, %v1821, 0
    %v1865 = vsel %vm1595, %v1822, 0
    %v1868 = vsel %vm1595, %v1823, 0
    %v1871 = vsel %vm1595, %v1824, 0
    %v1874 = vsel %vm1644, %v955, 0
    %v1877 = vsel %vm1644, %v956, 0
    %1879 = vmatprep.subr.mxu0 %v948
    %1880 = vmatpush1.msra.mxu0 %v947
    %1881 = vmatprep.subr.mxu0 %v950
    %1882 = vmatpush1.msra.mxu0 %v949
    %1883 = vmatprep.subr.mxu0 %v952
    %1884 = vmatpush1.msra.mxu0 %v951
    %1885 = vmatprep.subr.mxu0 %v954
    %1886 = vmatpush1.msra.mxu0 %v953
    %1887 = vmatprep.subr.mxu0 %v1877
    %1888 = vmatpush1.msra.mxu0 %v1874
    %1889 = vmatprep.subr.mxu0 0.0
    %1890 = vmatpush1.msra.mxu0 0.0
    %1891 = vmatprep.subr.mxu0 0.0
    %1892 = vmatpush1.msra.mxu0 0.0
    %1893 = vmatprep.subr.mxu0 0.0
    %1894 = vmatpush1.msra.mxu0 0.0
    %1895 = vmatprep.subr.mxu0 0.0
    %1896 = vmatpush1.msra.mxu0 0.0
    %1897 = vmatprep.subr.mxu0 0.0
    %1898 = vmatpush1.msra.mxu0 0.0
    %1899 = vmatprep.subr.mxu0 0.0
    %1900 = vmatpush1.msra.mxu0 0.0
    %1901 = vmatprep.subr.mxu0 0.0
    %1902 = vmatpush1.msra.mxu0 0.0
    %1903 = vmatprep.subr.mxu0 0.0
    %1904 = vmatpush1.msra.mxu0 0.0
    %1905 = vmatprep.subr.mxu0 0.0
    %1906 = vmatpush1.msra.mxu0 0.0
    %1907 = vmatprep.subr.mxu0 0.0
    %1908 = vmatpush1.msra.mxu0 0.0
    %1909 = vmatprep.subr.mxu0 0.0
    %1910 = vmatpush1.msra.mxu0 0.0
    %1911 = vmatprep.subr.mxu0 0.0
    %1912 = vmatpush1.msra.mxu0 0.0
    %1913 = vmatprep.subr.mxu0 0.0
    %1914 = vmatpush1.msra.mxu0 0.0
    %1915 = vmatprep.subr.mxu0 0.0
    %1916 = vmatpush1.msra.mxu0 0.0
    %1917 = vmatprep.subr.mxu0 0.0
    %1918 = vmatpush1.msra.mxu0 0.0
    %1919 = vmatprep.subr.mxu0 0.0
    %1920 = vmatpush1.msra.mxu0 0.0
    %1921 = vmatprep.subr.mxu0 0.0
    %1922 = vmatpush1.msra.mxu0 0.0
    %1923 = vmatprep.subr.mxu0 0.0
    %1924 = vmatpush1.msra.mxu0 0.0
    %1925 = vmatprep.subr.mxu0 0.0
    %1926 = vmatpush1.msra.mxu0 0.0
    %1927 = vmatprep.subr.mxu0 0.0
    %1928 = vmatpush1.msra.mxu0 0.0
    %1929 = vmatprep.subr.mxu0 0.0
    %1930 = vmatpush1.msra.mxu0 0.0
    %1931 = vmatprep.subr.mxu0 0.0
    %1932 = vmatpush1.msra.mxu0 0.0
    %1933 = vmatprep.subr.mxu0 0.0
    %1934 = vmatpush1.msra.mxu0 0.0
    %1935 = vmatprep.subr.mxu0 0.0
    %1936 = vmatpush1.msra.mxu0 0.0
    %1937 = vmatprep.subr.mxu0 0.0
    %1938 = vmatpush1.msra.mxu0 0.0
    %1939 = vmatprep.subr.mxu0 0.0
    %1940 = vmatpush1.msra.mxu0 0.0
    %1941 = vmatprep.subr.mxu0 0.0
    %1942 = vmatpush1.msra.mxu0 0.0
    %1943 = vmatprep.mubr.f32.mxu0 0.0
    %1944 = vmatmul.mubr.f32.gmra.mrb[0].mxu0 %v1826
    %v1945 = vpop.f32.mrb[0].mxu0
    %v1946 = vadd.f32 0.0, %v1945
    %v1947 = vpop.f32.mrb[0].mxu0
    %v1948 = vadd.f32 0.0, %v1947
    %1949 = vmatprep.mubr.f32.mxu0 0.0
    %1950 = vmatmul.mubr.f32.gmra.mrb[0].mxu0 %v1829
    %v1951 = vpop.f32.mrb[0].mxu0
    %v1952 = vadd.f32 0.0, %v1951
    %v1953 = vpop.f32.mrb[0].mxu0
    %v1954 = vadd.f32 0.0, %v1953
    %1955 = vmatprep.mubr.f32.mxu0 0.0
    %1956 = vmatmul.mubr.f32.gmra.mrb[0].mxu0 %v1832
    %v1957 = vpop.f32.mrb[0].mxu0
    %v1958 = vadd.f32 0.0, %v1957
    %v1959 = vpop.f32.mrb[0].mxu0
    %v1960 = vadd.f32 0.0, %v1959
    %1961 = vmatprep.mubr.f32.mxu0 0.0
    %1962 = vmatmul.mubr.f32.gmra.mrb[0].mxu0 %v1835
    %v1963 = vpop.f32.mrb[0].mxu0
    %v1964 = vadd.f32 0.0, %v1963
    %v1965 = vpop.f32.mrb[0].mxu0
    %v1966 = vadd.f32 0.0, %v1965
    %1967 = vmatprep.mubr.f32.mxu0 0.0
    %1968 = vmatmul.mubr.f32.gmra.mrb[0].mxu0 %v1838
    %v1969 = vpop.f32.mrb[0].mxu0
    %v1970 = vadd.f32 0.0, %v1969
    %v1971 = vpop.f32.mrb[0].mxu0
    %v1972 = vadd.f32 0.0, %v1971
    %1973 = vmatprep.mubr.f32.mxu0 0.0
    %1974 = vmatmul.mubr.f32.gmra.mrb[0].mxu0 %v1841
    %v1975 = vpop.f32.mrb[0].mxu0
    %v1976 = vadd.f32 0.0, %v1975
    %v1977 = vpop.f32.mrb[0].mxu0
    %v1978 = vadd.f32 0.0, %v1977
    %1979 = vmatprep.mubr.f32.mxu0 0.0
    %1980 = vmatmul.mubr.f32.gmra.mrb[0].mxu0 %v1844
    %v1981 = vpop.f32.mrb[0].mxu0
    %v1982 = vadd.f32 0.0, %v1981
    %v1983 = vpop.f32.mrb[0].mxu0
    %v1984 = vadd.f32 0.0, %v1983
    %1985 = vmatprep.mubr.f32.mxu0 0.0
    %1986 = vmatmul.mubr.f32.gmra.mrb[0].mxu0 %v1847
    %v1987 = vpop.f32.mrb[0].mxu0
    %v1988 = vadd.f32 0.0, %v1987
    %v1989 = vpop.f32.mrb[0].mxu0
    %v1990 = vadd.f32 0.0, %v1989
    %1991 = vmatprep.mubr.f32.mxu0 0.0
    %1992 = vmatmul.mubr.f32.gmra.mrb[0].mxu0 %v1850
    %v1993 = vpop.f32.mrb[0].mxu0
    %v1994 = vadd.f32 0.0, %v1993
    %v1995 = vpop.f32.mrb[0].mxu0
    %v1996 = vadd.f32 0.0, %v1995
    %1997 = vmatprep.mubr.f32.mxu0 0.0
    %1998 = vmatmul.mubr.f32.gmra.mrb[0].mxu0 %v1853
    %v1999 = vpop.f32.mrb[0].mxu0
    %v2000 = vadd.f32 0.0, %v1999
    %v2001 = vpop.f32.mrb[0].mxu0
    %v2002 = vadd.f32 0.0, %v2001
    %2003 = vmatprep.mubr.f32.mxu0 0.0
    %2004 = vmatmul.mubr.f32.gmra.mrb[0].mxu0 %v1856
    %v2005 = vpop.f32.mrb[0].mxu0
    %v2006 = vadd.f32 0.0, %v2005
    %v2007 = vpop.f32.mrb[0].mxu0
    %v2008 = vadd.f32 0.0, %v2007
    %2009 = vmatprep.mubr.f32.mxu0 0.0
    %2010 = vmatmul.mubr.f32.gmra.mrb[0].mxu0 %v1859
    %v2011 = vpop.f32.mrb[0].mxu0
    %v2012 = vadd.f32 0.0, %v2011
    %v2013 = vpop.f32.mrb[0].mxu0
    %v2014 = vadd.f32 0.0, %v2013
    %2015 = vmatprep.mubr.f32.mxu0 0.0
    %2016 = vmatmul.mubr.f32.gmra.mrb[0].mxu0 %v1862
    %v2017 = vpop.f32.mrb[0].mxu0
    %v2018 = vadd.f32 0.0, %v2017
    %v2019 = vpop.f32.mrb[0].mxu0
    %v2020 = vadd.f32 0.0, %v2019
    %2021 = vmatprep.mubr.f32.mxu0 0.0
    %2022 = vmatmul.mubr.f32.gmra.mrb[0].mxu0 %v1865
    %v2023 = vpop.f32.mrb[0].mxu0
    %v2024 = vadd.f32 0.0, %v2023
    %v2025 = vpop.f32.mrb[0].mxu0
    %v2026 = vadd.f32 0.0, %v2025
    %2027 = vmatprep.mubr.f32.mxu0 0.0
    %2028 = vmatmul.mubr.f32.gmra.mrb[0].mxu0 %v1868
    %v2029 = vpop.f32.mrb[0].mxu0
    %v2030 = vadd.f32 0.0, %v2029
    %v2031 = vpop.f32.mrb[0].mxu0
    %v2032 = vadd.f32 0.0, %v2031
    %2033 = vmatprep.mubr.f32.mxu0 0.0
    %2034 = vmatmul.mubr.f32.gmra.mrb[0].mxu0 %v1871
    %v2035 = vpop.f32.mrb[0].mxu0
    %v2036 = vadd.f32 0.0, %v2035
    %v2037 = vpop.f32.mrb[0].mxu0
    %v2038 = vadd.f32 0.0, %v2037
    %2039 = vdwg.mxu0
    %v2040 = vmul.f32 %v1044, %v1946
    %v2041 = vmul.f32 %v1045, %v1948
    %v2042 = vmul.f32 %v1046, %v1952
    %v2043 = vmul.f32 %v1047, %v1954
    %v2044 = vmul.f32 %v1048, %v1958
    %v2045 = vmul.f32 %v1049, %v1960
    %v2046 = vmul.f32 %v1050, %v1964
    %v2047 = vmul.f32 %v1051, %v1966
    %v2048 = vmul.f32 %v1052, %v1970
    %v2049 = vmul.f32 %v1053, %v1972
    %v2050 = vmul.f32 %v1054, %v1976
    %v2051 = vmul.f32 %v1055, %v1978
    %v2052 = vmul.f32 %v1056, %v1982
    %v2053 = vmul.f32 %v1057, %v1984
    %v2054 = vmul.f32 %v1058, %v1988
    %v2055 = vmul.f32 %v1059, %v1990
    %v2056 = vmul.f32 %v1060, %v1994
    %v2057 = vmul.f32 %v1061, %v1996
    %v2058 = vmul.f32 %v1062, %v2000
    %v2059 = vmul.f32 %v1063, %v2002
    %v2060 = vmul.f32 %v1064, %v2006
    %v2061 = vmul.f32 %v1065, %v2008
    %v2062 = vmul.f32 %v1066, %v2012
    %v2063 = vmul.f32 %v1067, %v2014
    %v2064 = vmul.f32 %v1068, %v2018
    %v2065 = vmul.f32 %v1069, %v2020
    %v2066 = vmul.f32 %v1070, %v2024
    %v2067 = vmul.f32 %v1071, %v2026
    %v2068 = vmul.f32 %v1072, %v2030
    %v2069 = vmul.f32 %v1073, %v2032
    %v2070 = vmul.f32 %v1074, %v2036
    %v2071 = vmul.f32 %v1075, %v2038
    %v2073 = vsel %vm282, %v2041, 0
    %v2076 = vsel %vm282, %v2043, 0
    %v2079 = vsel %vm282, %v2045, 0
    %v2082 = vsel %vm282, %v2047, 0
    %v2085 = vsel %vm282, %v2049, 0
    %v2088 = vsel %vm282, %v2051, 0
    %v2091 = vsel %vm282, %v2053, 0
    %v2094 = vsel %vm282, %v2055, 0
    %v2097 = vsel %vm282, %v2057, 0
    %v2100 = vsel %vm282, %v2059, 0
    %v2103 = vsel %vm282, %v2061, 0
    %v2106 = vsel %vm282, %v2063, 0
    %v2109 = vsel %vm282, %v2065, 0
    %v2112 = vsel %vm282, %v2067, 0
    %v2115 = vsel %vm282, %v2069, 0
    %v2118 = vsel %vm282, %v2071, 0
    %2120 = vmatprep.subr.mxu0 0.0
    %2121 = vmatpush1.msra.mxu0 %v962
    %2122 = vmatprep.subr.mxu0 0.0
    %2123 = vmatpush1.msra.mxu0 %v963
    %2124 = vmatprep.subr.mxu0 0.0
    %2125 = vmatpush1.msra.mxu0 %v964
    %2126 = vmatprep.subr.mxu0 0.0
    %2127 = vmatpush1.msra.mxu0 %v965
    %2128 = vmatprep.subr.mxu0 0.0
    %2129 = vmatpush1.msra.mxu0 %v966
    %2130 = vmatprep.subr.mxu0 0.0
    %2131 = vmatpush1.msra.mxu0 %v967
    %2132 = vmatprep.subr.mxu0 0.0
    %2133 = vmatpush1.msra.mxu0 %v968
    %2134 = vmatprep.subr.mxu0 0.0
    %2135 = vmatpush1.msra.mxu0 %v969
    %2136 = vmatprep.subr.mxu0 0.0
    %2137 = vmatpush1.msra.mxu0 %v970
    %2138 = vmatprep.subr.mxu0 0.0
    %2139 = vmatpush1.msra.mxu0 %v971
    %2140 = vmatprep.subr.mxu0 0.0
    %2141 = vmatpush1.msra.mxu0 %v972
    %2142 = vmatprep.subr.mxu0 0.0
    %2143 = vmatpush1.msra.mxu0 %v973
    %2144 = vmatprep.subr.mxu0 0.0
    %2145 = vmatpush1.msra.mxu0 %v974
    %2146 = vmatprep.subr.mxu0 0.0
    %2147 = vmatpush1.msra.mxu0 %v975
    %2148 = vmatprep.subr.mxu0 0.0
    %2149 = vmatpush1.msra.mxu0 %v976
    %2150 = vmatprep.subr.mxu0 0.0
    %2151 = vmatpush1.msra.mxu0 %v977
    %2152 = vmatprep.subr.mxu0 0.0
    %2153 = vmatpush1.msra.mxu0 %v978
    %2154 = vmatprep.subr.mxu0 0.0
    %2155 = vmatpush1.msra.mxu0 %v979
    %2156 = vmatprep.subr.mxu0 0.0
    %2157 = vmatpush1.msra.mxu0 0.0
    %2158 = vmatprep.subr.mxu0 0.0
    %2159 = vmatpush1.msra.mxu0 0.0
    %2160 = vmatprep.subr.mxu0 0.0
    %2161 = vmatpush1.msra.mxu0 0.0
    %2162 = vmatprep.subr.mxu0 0.0
    %2163 = vmatpush1.msra.mxu0 0.0
    %2164 = vmatprep.subr.mxu0 0.0
    %2165 = vmatpush1.msra.mxu0 0.0
    %2166 = vmatprep.subr.mxu0 0.0
    %2167 = vmatpush1.msra.mxu0 0.0
    %2168 = vmatprep.subr.mxu0 0.0
    %2169 = vmatpush1.msra.mxu0 0.0
    %2170 = vmatprep.subr.mxu0 0.0
    %2171 = vmatpush1.msra.mxu0 0.0
    %2172 = vmatprep.subr.mxu0 0.0
    %2173 = vmatpush1.msra.mxu0 0.0
    %2174 = vmatprep.subr.mxu0 0.0
    %2175 = vmatpush1.msra.mxu0 0.0
    %2176 = vmatprep.subr.mxu0 0.0
    %2177 = vmatpush1.msra.mxu0 0.0
    %2178 = vmatprep.subr.mxu0 0.0
    %2179 = vmatpush1.msra.mxu0 0.0
    %2180 = vmatprep.subr.mxu0 0.0
    %2181 = vmatpush1.msra.mxu0 0.0
    %2182 = vmatprep.subr.mxu0 0.0
    %2183 = vmatpush1.msra.mxu0 0.0
    %2184 = vmatprep.mubr.f32.mxu0 %v2073
    %2185 = vmatmul.mubr.f32.gmra.mrb[0].mxu0 %v2040
    %v2186 = vpop.f32.mrb[0].mxu0
    %v2187 = vadd.f32 %v202, %v2186
    %v2188 = vpop.f32.mrb[0].mxu0
    %2189 = vmatprep.mubr.f32.mxu0 %v2076
    %2190 = vmatmul.mubr.f32.gmra.mrb[0].mxu0 %v2042
    %v2191 = vpop.f32.mrb[0].mxu0
    %v2192 = vadd.f32 %v207, %v2191
    %v2193 = vpop.f32.mrb[0].mxu0
    %2194 = vmatprep.mubr.f32.mxu0 %v2079
    %2195 = vmatmul.mubr.f32.gmra.mrb[0].mxu0 %v2044
    %v2196 = vpop.f32.mrb[0].mxu0
    %v2197 = vadd.f32 %v212, %v2196
    %v2198 = vpop.f32.mrb[0].mxu0
    %2199 = vmatprep.mubr.f32.mxu0 %v2082
    %2200 = vmatmul.mubr.f32.gmra.mrb[0].mxu0 %v2046
    %v2201 = vpop.f32.mrb[0].mxu0
    %v2202 = vadd.f32 %v217, %v2201
    %v2203 = vpop.f32.mrb[0].mxu0
    %2204 = vmatprep.mubr.f32.mxu0 %v2085
    %2205 = vmatmul.mubr.f32.gmra.mrb[0].mxu0 %v2048
    %v2206 = vpop.f32.mrb[0].mxu0
    %v2207 = vadd.f32 %v222, %v2206
    %v2208 = vpop.f32.mrb[0].mxu0
    %2209 = vmatprep.mubr.f32.mxu0 %v2088
    %2210 = vmatmul.mubr.f32.gmra.mrb[0].mxu0 %v2050
    %v2211 = vpop.f32.mrb[0].mxu0
    %v2212 = vadd.f32 %v227, %v2211
    %v2213 = vpop.f32.mrb[0].mxu0
    %2214 = vmatprep.mubr.f32.mxu0 %v2091
    %2215 = vmatmul.mubr.f32.gmra.mrb[0].mxu0 %v2052
    %v2216 = vpop.f32.mrb[0].mxu0
    %v2217 = vadd.f32 %v232, %v2216
    %v2218 = vpop.f32.mrb[0].mxu0
    %2219 = vmatprep.mubr.f32.mxu0 %v2094
    %2220 = vmatmul.mubr.f32.gmra.mrb[0].mxu0 %v2054
    %v2221 = vpop.f32.mrb[0].mxu0
    %v2222 = vadd.f32 %v237, %v2221
    %v2223 = vpop.f32.mrb[0].mxu0
    %2224 = vmatprep.mubr.f32.mxu0 %v2097
    %2225 = vmatmul.mubr.f32.gmra.mrb[0].mxu0 %v2056
    %v2226 = vpop.f32.mrb[0].mxu0
    %v2227 = vadd.f32 %v242, %v2226
    %v2228 = vpop.f32.mrb[0].mxu0
    %2229 = vmatprep.mubr.f32.mxu0 %v2100
    %2230 = vmatmul.mubr.f32.gmra.mrb[0].mxu0 %v2058
    %v2231 = vpop.f32.mrb[0].mxu0
    %v2232 = vadd.f32 %v247, %v2231
    %v2233 = vpop.f32.mrb[0].mxu0
    %2234 = vmatprep.mubr.f32.mxu0 %v2103
    %2235 = vmatmul.mubr.f32.gmra.mrb[0].mxu0 %v2060
    %v2236 = vpop.f32.mrb[0].mxu0
    %v2237 = vadd.f32 %v252, %v2236
    %v2238 = vpop.f32.mrb[0].mxu0
    %2239 = vmatprep.mubr.f32.mxu0 %v2106
    %2240 = vmatmul.mubr.f32.gmra.mrb[0].mxu0 %v2062
    %v2241 = vpop.f32.mrb[0].mxu0
    %v2242 = vadd.f32 %v257, %v2241
    %v2243 = vpop.f32.mrb[0].mxu0
    %2244 = vmatprep.mubr.f32.mxu0 %v2109
    %2245 = vmatmul.mubr.f32.gmra.mrb[0].mxu0 %v2064
    %v2246 = vpop.f32.mrb[0].mxu0
    %v2247 = vadd.f32 %v262, %v2246
    %v2248 = vpop.f32.mrb[0].mxu0
    %2249 = vmatprep.mubr.f32.mxu0 %v2112
    %2250 = vmatmul.mubr.f32.gmra.mrb[0].mxu0 %v2066
    %v2251 = vpop.f32.mrb[0].mxu0
    %v2252 = vadd.f32 %v267, %v2251
    %v2253 = vpop.f32.mrb[0].mxu0
    %2254 = vmatprep.mubr.f32.mxu0 %v2115
    %2255 = vmatmul.mubr.f32.gmra.mrb[0].mxu0 %v2068
    %v2256 = vpop.f32.mrb[0].mxu0
    %v2257 = vadd.f32 %v272, %v2256
    %v2258 = vpop.f32.mrb[0].mxu0
    %2259 = vmatprep.mubr.f32.mxu0 %v2118
    %2260 = vmatmul.mubr.f32.gmra.mrb[0].mxu0 %v2070
    %v2261 = vpop.f32.mrb[0].mxu0
    %v2262 = vadd.f32 %v277, %v2261
    %v2263 = vpop.f32.mrb[0].mxu0
    %2264 = vdwg.mxu0
    %2265 = vst.msk [vmem:[#allocation2] sm:$0xff] %vm282, %v2187
    %2266 = vst.msk [vmem:[#allocation2 + $0x8] sm:$0xff] %vm282, %v2192
    %2267 = vst.msk [vmem:[#allocation2 + $0x10] sm:$0xff] %vm282, %v2197
    %2268 = vst.msk [vmem:[#allocation2 + $0x18] sm:$0xff] %vm282, %v2202
    %2269 = vst.msk [vmem:[#allocation2 + $0x20] sm:$0xff] %vm282, %v2207
    %2270 = vst.msk [vmem:[#allocation2 + $0x28] sm:$0xff] %vm282, %v2212
    %2271 = vst.msk [vmem:[#allocation2 + $0x30] sm:$0xff] %vm282, %v2217
    %2272 = vst.msk [vmem:[#allocation2 + $0x38] sm:$0xff] %vm282, %v2222
    %2273 = vst.msk [vmem:[#allocation2 + $0x40] sm:$0xff] %vm282, %v2227
    %2274 = vst.msk [vmem:[#allocation2 + $0x48] sm:$0xff] %vm282, %v2232
    %2275 = vst.msk [vmem:[#allocation2 + $0x50] sm:$0xff] %vm282, %v2237
    %2276 = vst.msk [vmem:[#allocation2 + $0x58] sm:$0xff] %vm282, %v2242
    %2277 = vst.msk [vmem:[#allocation2 + $0x60] sm:$0xff] %vm282, %v2247
    %2278 = vst.msk [vmem:[#allocation2 + $0x68] sm:$0xff] %vm282, %v2252
    %2279 = vst.msk [vmem:[#allocation2 + $0x70] sm:$0xff] %vm282, %v2257
    %2280 = vst.msk [vmem:[#allocation2 + $0x78] sm:$0xff] %vm282, %v2262
    // Predicated region
    $region46: #{baca_forward.3} parent=1 // pred_check
      _
    $region47: #{baca_forward.3} parent=1 // pred_check_branch
      %2282 = sbr.rel (0) target = $region49
    $region48: #{baca_forward.3} parent=1 // pred_region
      %s2284 = ssub.s32 2048, 2048
      %2285 = vsyncadd [#allocation3], %s2284
      %s2286 = sshll.u32 [#allocation2], 4
      %s2287 = int_to_ptr.vmem [resolvable:$true] %s2286
      %2292 = dma.vmem_to_hbm [thread:$0]  %s2287, 2048, %s11, [#allocation3], 128, 128, 8
    $region49: #{baca_forward.3} parent=1 // pred_fallthru
      _
    // Predicated region
    $region50: #{baca_forward.3} parent=1 // pred_check
      _
    $region51: #{baca_forward.3} parent=1 // pred_check_branch
      %2294 = sbr.rel (0) target = $region53
    $region52: #{baca_forward.3} parent=1 // pred_region
      %2295 = dma.done [#allocation3], 2048
    $region53: #{baca_forward.3} parent=1 // pred_fallthru
      _
    %2296 = vsyncpa [#allocation3], 1

</llo_original>
